<compile_context>
chip_gen: v7x
topology: tpu7x:2x2x1
jax: 0.10.0
libtpu: 0.0.40
codegen_flags: <defaults>
</compile_context>

<pallas_src>
import functools

import jax
import jax.numpy as jnp
from jax import lax
from jax.experimental import pallas as pl
from jax.experimental.pallas import tpu as pltpu


# ----------------------------------------------------------------------------
# Fused kernel: normalize proxy tile + loss1 online-logsumexp + P[T] gather
# + loss2 / top-1 in the final grid step.
# ----------------------------------------------------------------------------
def mp_balance_kernel(n_classes, compute_dtype,
                      t_sm_ref,                     # scalar-prefetch: labels (B,) SMEM
                      pt_ref, pos_ref, anc_ref, trow_ref, w_ref, b_ref,
                      loss1_ref, loss2_ref, corr_ref,
                      m_sc, l_sc, ptg_sc):
    k = pl.program_id(0)
    last = pl.num_programs(0) - 1
    _, tc = pt_ref.shape
    bsz = pos_ref.shape[0]

    @pl.when(k == 0)
    def _init():
        m_sc[...] = jnp.full_like(m_sc, -jnp.inf)
        l_sc[...] = jnp.zeros_like(l_sc)
        ptg_sc[...] = jnp.zeros_like(ptg_sc)

    w = w_ref[0, 0]
    b = b_ref[0, 0]

    # class ids covered by this tile + tail-tile validity mask
    col1 = lax.broadcasted_iota(jnp.int32, (1, tc), 1) + k * tc      # (1, tc)
    valid = col1 < n_classes

    # ---- fused F.normalize(p=2) of the proxy tile (classes are columns) ----
    tile = jnp.where(valid, pt_ref[...], 0.0)                        # (D, tc) f32
    sq = jnp.sum(tile * tile, axis=0, keepdims=True)                 # (1, tc)
    p_tile_f32 = tile * lax.rsqrt(jnp.maximum(sq, 1e-24))            # unit columns
    p_tile = p_tile_f32.astype(compute_dtype)

    pos = pos_ref[...].astype(compute_dtype)                         # (B, D)
    anc = anc_ref[...].astype(compute_dtype)                         # (B, D)

    # ---- MXU: logits against the normalized proxies of this tile ----
    logits_p = jnp.dot(pos, p_tile, preferred_element_type=jnp.float32)   # (B, tc)

    # ---- small (B, B) pos @ anchor^T; replaces the new_center scatter ----
    logits_a = lax.dot_general(pos, anc, (((1,), (1,)), ((), ())),
                               preferred_element_type=jnp.float32)        # (B, B)

    # Substitute columns T[j] with cos(pos_i, anchor_j) (new_center[T] = anchor).
    # B is a small static constant, so an unrolled loop of VPU selects is cheap;
    # for large B switch to a one-hot (B,B)x(B,tc) matmul instead.
    logits1 = logits_p
    for j in range(bsz):
        logits1 = jnp.where(col1 == t_sm_ref[j], logits_a[:, j:j + 1], logits1)
    logits1 = jnp.where(valid, logits1 * w + b, -jnp.inf)

    # ---- online logsumexp over class tiles (loss1 denominator) ----
    m_prev = m_sc[...]
    m_new = jnp.maximum(m_prev, jnp.max(logits1, axis=-1, keepdims=True))
    l_sc[...] = (jnp.exp(m_prev - m_new) * l_sc[...]
                 + jnp.sum(jnp.exp(logits1 - m_new), axis=-1, keepdims=True))
    m_sc[...] = m_new

    # ---- in-kernel gather of P[T]^T (D, B) for loss2 via one-hot matmul ----
    rowcls = lax.broadcasted_iota(jnp.int32, (tc, bsz), 0) + k * tc
    onehot_t = (rowcls == trow_ref[...]).astype(compute_dtype)            # (tc, B)
    ptg_sc[...] += jnp.dot(p_tile, onehot_t, preferred_element_type=jnp.float32)

    @pl.when(k == last)
    def _finalize():
        eye = (lax.broadcasted_iota(jnp.int32, (bsz, bsz), 0)
               == lax.broadcasted_iota(jnp.int32, (bsz, bsz), 1))

        # loss1: target logit is cos(pos_i, anchor_i) (its column was substituted)
        tgt1 = jnp.sum(jnp.where(eye, logits_a, 0.0),
                       axis=-1, keepdims=True) * w + b
        loss1_ref[...] = m_sc[...] + jnp.log(l_sc[...]) - tgt1

        # loss2: CE(anchor @ P[T]^T * w + b, arange(B)) + top-1 correctness
        logits2 = jnp.dot(anc, ptg_sc[...].astype(compute_dtype),
                          preferred_element_type=jnp.float32) * w + b      # (B, B)
        m2 = jnp.max(logits2, axis=-1, keepdims=True)
        lse2 = m2 + jnp.log(jnp.sum(jnp.exp(logits2 - m2), axis=-1, keepdims=True))
        diag2 = jnp.sum(jnp.where(eye, logits2, 0.0), axis=-1, keepdims=True)
        loss2_ref[...] = lse2 - diag2

        colb = lax.broadcasted_iota(jnp.int32, (bsz, bsz), 1)
        argmax2 = jnp.min(jnp.where(logits2 == m2, colb, jnp.int32(bsz)),
                          axis=-1, keepdims=True)         # first-occurrence argmax
        rowid = lax.broadcasted_iota(jnp.int32, (bsz, 1), 0)
        corr_ref[...] = (argmax2 == rowid).astype(jnp.float32)


def _mp_balance_fused(t_i32, proxies_t, out_positive, out_anchor, t_row,
                      w_arr, b_arr, *, n_classes, tc, compute_dtype):
    d = proxies_t.shape[0]
    bsz = out_positive.shape[0]
    n_tiles = pl.cdiv(n_classes, tc)
    kernel = functools.partial(mp_balance_kernel, n_classes, compute_dtype)
    return pl.pallas_call(
        kernel,
        out_shape=(jax.ShapeDtypeStruct((bsz, 1), jnp.float32),   # loss1 per row
                   jax.ShapeDtypeStruct((bsz, 1), jnp.float32),   # loss2 per row
                   jax.ShapeDtypeStruct((bsz, 1), jnp.float32)),  # top-1 flags
        grid_spec=pltpu.PrefetchScalarGridSpec(
            num_scalar_prefetch=1,                                 # labels -> SMEM
            grid=(n_tiles,),
            in_specs=[
                pl.BlockSpec((d, tc), lambda k, t: (0, k)),        # streamed class tile
                pl.BlockSpec((bsz, d), lambda k, t: (0, 0)),       # out_positive (resident)
                pl.BlockSpec((bsz, d), lambda k, t: (0, 0)),       # out_anchor (resident)
                pl.BlockSpec((1, bsz), lambda k, t: (0, 0)),       # labels, lane layout
                pl.BlockSpec(memory_space=pltpu.MemorySpace.SMEM),  # w
                pl.BlockSpec(memory_space=pltpu.MemorySpace.SMEM),  # b
            ],
            out_specs=(pl.BlockSpec((bsz, 1), lambda k, t: (0, 0)),
                       pl.BlockSpec((bsz, 1), lambda k, t: (0, 0)),
                       pl.BlockSpec((bsz, 1), lambda k, t: (0, 0))),
            scratch_shapes=[
                pltpu.VMEM((bsz, 1), jnp.float32),   # running max
                pltpu.VMEM((bsz, 1), jnp.float32),   # running sum-exp
                pltpu.VMEM((d, bsz), jnp.float32),   # accumulated P[T]^T
            ],
        ),
        compiler_params=pltpu.CompilerParams(
            dimension_semantics=("arbitrary",)),                   # class-reduction axis
    )(t_i32, proxies_t, out_positive, out_anchor, t_row, w_arr, b_arr)


def _round_up(x, m):
    return ((x + m - 1) // m) * m


# ----------------------------------------------------------------------------
# Full MP_Balance forward
# ----------------------------------------------------------------------------
@functools.partial(jax.jit, static_argnames=("n_classes", "lam", "tc", "compute_dtype"))
def mp_balance_forward(X, T, proxies, w, b, *, n_classes, lam=0.5, tc=512,
                       compute_dtype=jnp.float32):
    _, _, d = X.shape
    out_anchor = jnp.mean(X[:, 1:, :], axis=1)       # (B, D)
    out_positive = X[:, 0, :]                        # (B, D)

    # TODO(synk): store the proxy parameter as (D, nClasses) so this one-time
    # transpose (done so the MXU sees a plain (M,K)x(K,N) matmul) disappears.
    proxies_t = proxies.T                            # (D, nClasses)

    w_arr = jnp.asarray(w, jnp.float32).reshape(1, 1)
    b_arr = jnp.asarray(b, jnp.float32).reshape(1, 1)
    t_i32 = T.astype(jnp.int32)                      # (B,)  scalar-prefetch labels
    t_row = t_i32.reshape(1, -1)                     # (1,B) lane layout for one-hot

    # tc >= 256 fills the 2x256 MXU on v6e/v7x; cap so the double-buffered f32
    # class tile stays ~4 MiB (safe within v7x's smaller scoped VMEM).
    tc_eff = min(_round_up(tc, 128), _round_up(n_classes, 128))
    tc_cap = max(128, ((4 * 1024 * 1024) // (2 * d * 4)) // 128 * 128)
    tc_eff = min(tc_eff, tc_cap)

    loss1, loss2, correct = _mp_balance_fused(
        t_i32, proxies_t, out_positive, out_anchor, t_row, w_arr, b_arr,
        n_classes=n_classes, tc=tc_eff, compute_dtype=compute_dtype)

    total = jnp.mean(loss1) + lam * jnp.mean(loss2)
    prec1 = jnp.mean(correct) * 100.0
    return total, prec1


# ----------------------------------------------------------------------------
# Pure-JAX reference (mirrors the PyTorch forward).  Operands are rounded to
# compute_dtype and the dot is done in f32, so it is portable to backends
# that lack a BF16xBF16=F32 dot while matching the kernel's operand precision.
# ----------------------------------------------------------------------------
def mp_balance_reference(X, T, proxies, w, b, *, n_classes, lam=0.5,
                         compute_dtype=jnp.float32):
    B = X.shape[0]
    out_anchor = jnp.mean(X[:, 1:, :], axis=1)
    out_positive = X[:, 0, :]
    P = proxies / jnp.maximum(
        jnp.linalg.norm(proxies, axis=1, keepdims=True), 1e-12)
    new_center = P.at[T].set(out_anchor)

    def mm(a, bmat):   # a @ bmat.T, operands rounded to compute_dtype, f32 dot
        a_c = a.astype(compute_dtype).astype(jnp.float32)
        b_c = bmat.astype(compute_dtype).astype(jnp.float32)
        return lax.dot_general(a_c, b_c, (((1,), (1,)), ((), ())),
                               preferred_element_type=jnp.float32)

    cs = mm(out_positive, new_center) * w + b
    one_hot = jax.nn.one_hot(T, n_classes, dtype=jnp.float32)
    loss1 = -jnp.sum(one_hot * jax.nn.log_softmax(cs, axis=-1), axis=-1)

    cs2 = mm(out_anchor, P[T]) * w + b
    label = jnp.arange(B)
    logp2 = jax.nn.log_softmax(cs2, axis=-1)
    loss2 = -jnp.mean(logp2[label, label])
    prec1 = jnp.mean((jnp.argmax(cs2, axis=-1) == label).astype(jnp.float32)) * 100.0
    return loss1.mean() + lam * loss2, prec1


if __name__ == "__main__":
    # small, TPU-tile-friendly shapes
    B, M, D, N_CLASSES = 8, 3, 128, 512
    W_INIT, B_INIT, LAMBDA = 10.0, -5.0, 0.5

    key = jax.random.PRNGKey(0)
    kx, kp, kt = jax.random.split(key, 3)

    X = jax.random.normal(kx, (B, M, D), dtype=jnp.float32)
    # kaiming_normal_(mode='fan_out') on (nClasses, nOut): std = sqrt(2/nClasses)
    proxies = jax.random.normal(kp, (N_CLASSES, D), dtype=jnp.float32) * jnp.sqrt(
        2.0 / N_CLASSES)
    # unique labels per batch (required by the new_center scatter semantics)
    T = jax.random.permutation(kt, N_CLASSES)[:B].astype(jnp.int32)

    # ---- f32 MXU path (tight check against the f32 reference) ----
    # NOTE: compute_dtype=jnp.bfloat16 is supported by the kernel on real TPU
    # MXUs (halves the proxy-tile HBM stream), but is intentionally not
    # exercised here because some executors lack a BF16xBF16=F32 dot.
    loss, prec1 = mp_balance_forward(
        X, T, proxies, W_INIT, B_INIT, n_classes=N_CLASSES, lam=LAMBDA,
        compute_dtype=jnp.float32)
    loss = jax.block_until_ready(loss)
    prec1 = jax.block_until_ready(prec1)
    ref_loss, ref_prec = mp_balance_reference(
        X, T, proxies, W_INIT, B_INIT, n_classes=N_CLASSES, lam=LAMBDA,
        compute_dtype=jnp.float32)
    assert jnp.allclose(loss, ref_loss, rtol=1e-3, atol=1e-3), (loss, ref_loss)
    assert jnp.allclose(prec1, ref_prec, rtol=1e-3, atol=1e-3), (prec1, ref_prec)

    print("KERNEL_OK")
</pallas_src>

<mosaic_0001>
module attributes {stable_mosaic.version = 11 : i64} {
  func.func @mp_balance_kernel(%arg0: i32, %arg1: memref<8xi32, #tpu.memory_space<smem>>, %arg2: memref<128x512xf32, #tpu.memory_space<vmem>>, %arg3: memref<8x128xf32, #tpu.memory_space<vmem>>, %arg4: memref<8x128xf32, #tpu.memory_space<vmem>>, %arg5: memref<1x8xi32, #tpu.memory_space<vmem>>, %arg6: memref<1x1xf32, #tpu.memory_space<smem>>, %arg7: memref<1x1xf32, #tpu.memory_space<smem>>, %arg8: memref<8x1xf32, #tpu.memory_space<vmem>>, %arg9: memref<8x1xf32, #tpu.memory_space<vmem>>, %arg10: memref<8x1xf32, #tpu.memory_space<vmem>>, %arg11: memref<8x1xf32, #tpu.memory_space<vmem>>, %arg12: memref<8x1xf32, #tpu.memory_space<vmem>>, %arg13: memref<128x8xf32, #tpu.memory_space<vmem>>) attributes {dimension_semantics = [#tpu.dimension_semantics<arbitrary>], iteration_bounds = array<i64: 1>, scalar_prefetch = 1 : i64, scratch_operands = 3 : i64, tpu.core_type = #tpu.core_type<tc>, window_params = [{transform_indices = @transform_0, window_bounds = array<i64: 128, 512>}, {pipeline_mode = #tpu.pipeline_mode<synchronous>, transform_indices = @transform_1, window_bounds = array<i64: 8, 128>}, {pipeline_mode = #tpu.pipeline_mode<synchronous>, transform_indices = @transform_2, window_bounds = array<i64: 8, 128>}, {pipeline_mode = #tpu.pipeline_mode<synchronous>, transform_indices = @transform_3, window_bounds = array<i64: 1, 8>}, {transform_indices = @transform_4, window_bounds = array<i64: 1, 1>}, {transform_indices = @transform_5, window_bounds = array<i64: 1, 1>}, {pipeline_mode = #tpu.pipeline_mode<synchronous>, transform_indices = @transform_6, window_bounds = array<i64: 8, 1>}, {pipeline_mode = #tpu.pipeline_mode<synchronous>, transform_indices = @transform_7, window_bounds = array<i64: 8, 1>}, {pipeline_mode = #tpu.pipeline_mode<synchronous>, transform_indices = @transform_8, window_bounds = array<i64: 8, 1>}]} {
    %c0_i32 = arith.constant 0 : i32
    %0 = arith.cmpi eq, %arg0, %c0_i32 : i32
    %1 = arith.extui %0 : i1 to i32
    %c0_i32_0 = arith.constant 0 : i32
    %2 = arith.cmpi ne, %1, %c0_i32_0 : i32
    scf.if %2 {
      %cst_37 = arith.constant 0xFF800000 : f32
      %140 = vector.broadcast %cst_37 : f32 to vector<8x1xf32>
      %c0_38 = arith.constant 0 : index
      %c0_39 = arith.constant 0 : index
      %141 = vector.load %arg11[%c0_38, %c0_39] : memref<8x1xf32, #tpu.memory_space<vmem>>, vector<8x1xf32>
      tpu.vector_store %arg11[%c0_38, %c0_39], %140 {strides = array<i32>} : memref<8x1xf32, #tpu.memory_space<vmem>>, vector<8x1xf32>,
      %cst_40 = arith.constant 0.000000e+00 : f32
      %142 = vector.broadcast %cst_40 : f32 to vector<8x1xf32>
      %c0_41 = arith.constant 0 : index
      %c0_42 = arith.constant 0 : index
      %143 = vector.load %arg12[%c0_41, %c0_42] : memref<8x1xf32, #tpu.memory_space<vmem>>, vector<8x1xf32>
      tpu.vector_store %arg12[%c0_41, %c0_42], %142 {strides = array<i32>} : memref<8x1xf32, #tpu.memory_space<vmem>>, vector<8x1xf32>,
      %cst_43 = arith.constant 0.000000e+00 : f32
      %144 = vector.broadcast %cst_43 : f32 to vector<128x8xf32>
      %c0_44 = arith.constant 0 : index
      %c0_45 = arith.constant 0 : index
      %145 = vector.load %arg13[%c0_44, %c0_45] : memref<128x8xf32, #tpu.memory_space<vmem>>, vector<128x8xf32>
      tpu.vector_store %arg13[%c0_44, %c0_45], %144 {strides = array<i32>} : memref<128x8xf32, #tpu.memory_space<vmem>>, vector<128x8xf32>,
    } else {
    }
    %c0 = arith.constant 0 : index
    %c0_1 = arith.constant 0 : index
    %3 = memref.load %arg6[%c0, %c0_1] : memref<1x1xf32, #tpu.memory_space<smem>>
    %c0_2 = arith.constant 0 : index
    %c0_3 = arith.constant 0 : index
    %4 = memref.load %arg7[%c0_2, %c0_3] : memref<1x1xf32, #tpu.memory_space<smem>>
    %5 = tpu.iota {dimensions = array<i32: 1>} : vector<1x512xi32>
    %c512_i32 = arith.constant 512 : i32
    %6 = arith.muli %arg0, %c512_i32 : i32
    %7 = vector.broadcast %6 : i32 to vector<1x512xi32>
    %8 = arith.addi %5, %7 : vector<1x512xi32>
    %c512_i32_4 = arith.constant 512 : i32
    %9 = vector.broadcast %c512_i32_4 : i32 to vector<1x512xi32>
    %10 = arith.cmpi slt, %8, %9 : vector<1x512xi32>
    %c0_5 = arith.constant 0 : index
    %c0_6 = arith.constant 0 : index
    %11 = vector.load %arg2[%c0_5, %c0_6] : memref<128x512xf32, #tpu.memory_space<vmem>>, vector<128x512xf32>
    %cst = arith.constant 0.000000e+00 : f32
    %12 = vector.shape_cast %10 : vector<1x512xi1> to vector<1x512xi1>
    %13 = vector.broadcast %12 : vector<1x512xi1> to vector<128x512xi1>
    %14 = vector.broadcast %cst : f32 to vector<128x512xf32>
    %15 = arith.select %13, %11, %14 : vector<128x512xi1>, vector<128x512xf32>
    %16 = arith.mulf %15, %15 : vector<128x512xf32>
    %cst_7 = arith.constant dense<0.000000e+00> : vector<512xf32>
    %17 = vector.multi_reduction <add>, %16, %cst_7 [0] : vector<128x512xf32> to vector<512xf32>
    %18 = vector.shape_cast %17 : vector<512xf32> to vector<1x512xf32>
    %cst_8 = arith.constant 1.000000e-24 : f32
    %19 = vector.broadcast %cst_8 : f32 to vector<1x512xf32>
    %20 = arith.maximumf %18, %19 : vector<1x512xf32>
    %21 = math.rsqrt %20 : vector<1x512xf32>
    %22 = vector.broadcast %21 : vector<1x512xf32> to vector<128x512xf32>
    %23 = arith.mulf %15, %22 : vector<128x512xf32>
    %c0_9 = arith.constant 0 : index
    %c0_10 = arith.constant 0 : index
    %24 = vector.load %arg3[%c0_9, %c0_10] : memref<8x128xf32, #tpu.memory_space<vmem>>, vector<8x128xf32>
    %c0_11 = arith.constant 0 : index
    %c0_12 = arith.constant 0 : index
    %25 = vector.load %arg4[%c0_11, %c0_12] : memref<8x128xf32, #tpu.memory_space<vmem>>, vector<8x128xf32>
    %cst_13 = arith.constant dense<0.000000e+00> : vector<8x512xf32>
    %26 = tpu.matmul %24, %23, %cst_13 {dimension_numbers = #tpu.dot_dimension_numbers<[1], [0], [0], [1], [0, 0, 1, 1], [], []>} : vector<8x128xf32>, vector<128x512xf32>, vector<8x512xf32> -> vector<8x512xf32>
    %cst_14 = arith.constant dense<0.000000e+00> : vector<8x8xf32>
    %27 = tpu.matmul %24, %25, %cst_14 {dimension_numbers = #tpu.dot_dimension_numbers<[1], [1], [0], [0], [0, 0, 1, 0], [], []>} : vector<8x128xf32>, vector<8x128xf32>, vector<8x8xf32> -> vector<8x8xf32>
    %c0_15 = arith.constant 0 : index
    %28 = memref.load %arg1[%c0_15] : memref<8xi32, #tpu.memory_space<smem>>
    %29 = vector.broadcast %28 : i32 to vector<1x512xi32>
    %30 = arith.cmpi eq, %8, %29 : vector<1x512xi32>
    %31 = vector.extract_strided_slice %27 {offsets = [0, 0], sizes = [8, 1], strides = [1, 1]} : vector<8x8xf32> to vector<8x1xf32>
    %32 = vector.shape_cast %30 : vector<1x512xi1> to vector<1x512xi1>
    %33 = vector.broadcast %32 : vector<1x512xi1> to vector<8x512xi1>
    %34 = vector.shape_cast %31 : vector<8x1xf32> to vector<8x1xf32>
    %35 = vector.broadcast %34 : vector<8x1xf32> to vector<8x512xf32>
    %36 = arith.select %33, %35, %26 : vector<8x512xi1>, vector<8x512xf32>
    %c1 = arith.constant 1 : index
    %37 = memref.load %arg1[%c1] : memref<8xi32, #tpu.memory_space<smem>>
    %38 = vector.broadcast %37 : i32 to vector<1x512xi32>
    %39 = arith.cmpi eq, %8, %38 : vector<1x512xi32>
    %40 = vector.extract_strided_slice %27 {offsets = [0, 1], sizes = [8, 1], strides = [1, 1]} : vector<8x8xf32> to vector<8x1xf32>
    %41 = vector.shape_cast %39 : vector<1x512xi1> to vector<1x512xi1>
    %42 = vector.broadcast %41 : vector<1x512xi1> to vector<8x512xi1>
    %43 = vector.shape_cast %40 : vector<8x1xf32> to vector<8x1xf32>
    %44 = vector.broadcast %43 : vector<8x1xf32> to vector<8x512xf32>
    %45 = arith.select %42, %44, %36 : vector<8x512xi1>, vector<8x512xf32>
    %c2 = arith.constant 2 : index
    %46 = memref.load %arg1[%c2] : memref<8xi32, #tpu.memory_space<smem>>
    %47 = vector.broadcast %46 : i32 to vector<1x512xi32>
    %48 = arith.cmpi eq, %8, %47 : vector<1x512xi32>
    %49 = vector.extract_strided_slice %27 {offsets = [0, 2], sizes = [8, 1], strides = [1, 1]} : vector<8x8xf32> to vector<8x1xf32>
    %50 = vector.shape_cast %48 : vector<1x512xi1> to vector<1x512xi1>
    %51 = vector.broadcast %50 : vector<1x512xi1> to vector<8x512xi1>
    %52 = vector.shape_cast %49 : vector<8x1xf32> to vector<8x1xf32>
    %53 = vector.broadcast %52 : vector<8x1xf32> to vector<8x512xf32>
    %54 = arith.select %51, %53, %45 : vector<8x512xi1>, vector<8x512xf32>
    %c3 = arith.constant 3 : index
    %55 = memref.load %arg1[%c3] : memref<8xi32, #tpu.memory_space<smem>>
    %56 = vector.broadcast %55 : i32 to vector<1x512xi32>
    %57 = arith.cmpi eq, %8, %56 : vector<1x512xi32>
    %58 = vector.extract_strided_slice %27 {offsets = [0, 3], sizes = [8, 1], strides = [1, 1]} : vector<8x8xf32> to vector<8x1xf32>
    %59 = vector.shape_cast %57 : vector<1x512xi1> to vector<1x512xi1>
    %60 = vector.broadcast %59 : vector<1x512xi1> to vector<8x512xi1>
    %61 = vector.shape_cast %58 : vector<8x1xf32> to vector<8x1xf32>
    %62 = vector.broadcast %61 : vector<8x1xf32> to vector<8x512xf32>
    %63 = arith.select %60, %62, %54 : vector<8x512xi1>, vector<8x512xf32>
    %c4 = arith.constant 4 : index
    %64 = memref.load %arg1[%c4] : memref<8xi32, #tpu.memory_space<smem>>
    %65 = vector.broadcast %64 : i32 to vector<1x512xi32>
    %66 = arith.cmpi eq, %8, %65 : vector<1x512xi32>
    %67 = vector.extract_strided_slice %27 {offsets = [0, 4], sizes = [8, 1], strides = [1, 1]} : vector<8x8xf32> to vector<8x1xf32>
    %68 = vector.shape_cast %66 : vector<1x512xi1> to vector<1x512xi1>
    %69 = vector.broadcast %68 : vector<1x512xi1> to vector<8x512xi1>
    %70 = vector.shape_cast %67 : vector<8x1xf32> to vector<8x1xf32>
    %71 = vector.broadcast %70 : vector<8x1xf32> to vector<8x512xf32>
    %72 = arith.select %69, %71, %63 : vector<8x512xi1>, vector<8x512xf32>
    %c5 = arith.constant 5 : index
    %73 = memref.load %arg1[%c5] : memref<8xi32, #tpu.memory_space<smem>>
    %74 = vector.broadcast %73 : i32 to vector<1x512xi32>
    %75 = arith.cmpi eq, %8, %74 : vector<1x512xi32>
    %76 = vector.extract_strided_slice %27 {offsets = [0, 5], sizes = [8, 1], strides = [1, 1]} : vector<8x8xf32> to vector<8x1xf32>
    %77 = vector.shape_cast %75 : vector<1x512xi1> to vector<1x512xi1>
    %78 = vector.broadcast %77 : vector<1x512xi1> to vector<8x512xi1>
    %79 = vector.shape_cast %76 : vector<8x1xf32> to vector<8x1xf32>
    %80 = vector.broadcast %79 : vector<8x1xf32> to vector<8x512xf32>
    %81 = arith.select %78, %80, %72 : vector<8x512xi1>, vector<8x512xf32>
    %c6 = arith.constant 6 : index
    %82 = memref.load %arg1[%c6] : memref<8xi32, #tpu.memory_space<smem>>
    %83 = vector.broadcast %82 : i32 to vector<1x512xi32>
    %84 = arith.cmpi eq, %8, %83 : vector<1x512xi32>
    %85 = vector.extract_strided_slice %27 {offsets = [0, 6], sizes = [8, 1], strides = [1, 1]} : vector<8x8xf32> to vector<8x1xf32>
    %86 = vector.shape_cast %84 : vector<1x512xi1> to vector<1x512xi1>
    %87 = vector.broadcast %86 : vector<1x512xi1> to vector<8x512xi1>
    %88 = vector.shape_cast %85 : vector<8x1xf32> to vector<8x1xf32>
    %89 = vector.broadcast %88 : vector<8x1xf32> to vector<8x512xf32>
    %90 = arith.select %87, %89, %81 : vector<8x512xi1>, vector<8x512xf32>
    %c7 = arith.constant 7 : index
    %91 = memref.load %arg1[%c7] : memref<8xi32, #tpu.memory_space<smem>>
    %92 = vector.broadcast %91 : i32 to vector<1x512xi32>
    %93 = arith.cmpi eq, %8, %92 : vector<1x512xi32>
    %94 = vector.extract_strided_slice %27 {offsets = [0, 7], sizes = [8, 1], strides = [1, 1]} : vector<8x8xf32> to vector<8x1xf32>
    %95 = vector.shape_cast %93 : vector<1x512xi1> to vector<1x512xi1>
    %96 = vector.broadcast %95 : vector<1x512xi1> to vector<8x512xi1>
    %97 = vector.shape_cast %94 : vector<8x1xf32> to vector<8x1xf32>
    %98 = vector.broadcast %97 : vector<8x1xf32> to vector<8x512xf32>
    %99 = arith.select %96, %98, %90 : vector<8x512xi1>, vector<8x512xf32>
    %100 = vector.broadcast %3 : f32 to vector<8x512xf32>
    %101 = arith.mulf %99, %100 : vector<8x512xf32>
    %102 = vector.broadcast %4 : f32 to vector<8x512xf32>
    %103 = arith.addf %101, %102 : vector<8x512xf32>
    %cst_16 = arith.constant 0xFF800000 : f32
    %104 = vector.shape_cast %10 : vector<1x512xi1> to vector<1x512xi1>
    %105 = vector.broadcast %104 : vector<1x512xi1> to vector<8x512xi1>
    %106 = vector.broadcast %cst_16 : f32 to vector<8x512xf32>
    %107 = arith.select %105, %103, %106 : vector<8x512xi1>, vector<8x512xf32>
    %c0_17 = arith.constant 0 : index
    %c0_18 = arith.constant 0 : index
    %108 = vector.load %arg11[%c0_17, %c0_18] : memref<8x1xf32, #tpu.memory_space<vmem>>, vector<8x1xf32>
    %cst_19 = arith.constant dense<0xFF800000> : vector<8xf32>
    %109 = vector.multi_reduction <maximumf>, %107, %cst_19 [1] : vector<8x512xf32> to vector<8xf32>
    %110 = vector.shape_cast %109 : vector<8xf32> to vector<8x1xf32>
    %111 = arith.maximumf %108, %110 : vector<8x1xf32>
    %112 = arith.subf %108, %111 : vector<8x1xf32>
    %113 = math.exp %112 : vector<8x1xf32>
    %c0_20 = arith.constant 0 : index
    %c0_21 = arith.constant 0 : index
    %114 = vector.load %arg12[%c0_20, %c0_21] : memref<8x1xf32, #tpu.memory_space<vmem>>, vector<8x1xf32>
    %115 = arith.mulf %113, %114 : vector<8x1xf32>
    %116 = vector.broadcast %111 : vector<8x1xf32> to vector<8x512xf32>
    %117 = arith.subf %107, %116 : vector<8x512xf32>
    %118 = math.exp %117 : vector<8x512xf32>
    %cst_22 = arith.constant dense<0.000000e+00> : vector<8xf32>
    %119 = vector.multi_reduction <add>, %118, %cst_22 [1] : vector<8x512xf32> to vector<8xf32>
    %120 = vector.shape_cast %119 : vector<8xf32> to vector<8x1xf32>
    %121 = arith.addf %115, %120 : vector<8x1xf32>
    %c0_23 = arith.constant 0 : index
    %c0_24 = arith.constant 0 : index
    %122 = vector.load %arg12[%c0_23, %c0_24] : memref<8x1xf32, #tpu.memory_space<vmem>>, vector<8x1xf32>
    tpu.vector_store %arg12[%c0_23, %c0_24], %121 {strides = array<i32>} : memref<8x1xf32, #tpu.memory_space<vmem>>, vector<8x1xf32>,
    %c0_25 = arith.constant 0 : index
    %c0_26 = arith.constant 0 : index
    %123 = vector.load %arg11[%c0_25, %c0_26] : memref<8x1xf32, #tpu.memory_space<vmem>>, vector<8x1xf32>
    tpu.vector_store %arg11[%c0_25, %c0_26], %111 {strides = array<i32>} : memref<8x1xf32, #tpu.memory_space<vmem>>, vector<8x1xf32>,
    %124 = tpu.iota {dimensions = array<i32: 0>} : vector<512x8xi32>
    %c512_i32_27 = arith.constant 512 : i32
    %125 = arith.muli %arg0, %c512_i32_27 : i32
    %126 = vector.broadcast %125 : i32 to vector<512x8xi32>
    %127 = arith.addi %124, %126 : vector<512x8xi32>
    %c0_28 = arith.constant 0 : index
    %c0_29 = arith.constant 0 : index
    %128 = vector.load %arg5[%c0_28, %c0_29] : memref<1x8xi32, #tpu.memory_space<vmem>>, vector<1x8xi32>
    %129 = vector.broadcast %128 : vector<1x8xi32> to vector<512x8xi32>
    %130 = arith.cmpi eq, %127, %129 : vector<512x8xi32>
    %131 = arith.extui %130 : vector<512x8xi1> to vector<512x8xi32>
    %132 = arith.sitofp %131 : vector<512x8xi32> to vector<512x8xf32>
    %c0_30 = arith.constant 0 : index
    %c0_31 = arith.constant 0 : index
    %133 = vector.load %arg13[%c0_30, %c0_31] : memref<128x8xf32, #tpu.memory_space<vmem>>, vector<128x8xf32>
    %cst_32 = arith.constant dense<0.000000e+00> : vector<128x8xf32>
    %134 = tpu.matmul %23, %132, %cst_32 {dimension_numbers = #tpu.dot_dimension_numbers<[1], [0], [0], [1], [0, 0, 1, 1], [], []>} : vector<128x512xf32>, vector<512x8xf32>, vector<128x8xf32> -> vector<128x8xf32>
    %135 = arith.addf %133, %134 : vector<128x8xf32>
    %c0_33 = arith.constant 0 : index
    %c0_34 = arith.constant 0 : index
    %136 = vector.load %arg13[%c0_33, %c0_34] : memref<128x8xf32, #tpu.memory_space<vmem>>, vector<128x8xf32>
    tpu.vector_store %arg13[%c0_33, %c0_34], %135 {strides = array<i32>} : memref<128x8xf32, #tpu.memory_space<vmem>>, vector<128x8xf32>,
    %c0_i32_35 = arith.constant 0 : i32
    %137 = arith.cmpi eq, %arg0, %c0_i32_35 : i32
    %138 = arith.extui %137 : i1 to i32
    %c0_i32_36 = arith.constant 0 : i32
    %139 = arith.cmpi ne, %138, %c0_i32_36 : i32
    scf.if %139 {
      %140 = tpu.iota {dimensions = array<i32: 0>} : vector<8x8xi32>
      %141 = tpu.iota {dimensions = array<i32: 1>} : vector<8x8xi32>
      %142 = arith.cmpi eq, %140, %141 : vector<8x8xi32>
      %cst_37 = arith.constant 0.000000e+00 : f32
      %143 = vector.broadcast %cst_37 : f32 to vector<8x8xf32>
      %144 = arith.select %142, %27, %143 : vector<8x8xi1>, vector<8x8xf32>
      %cst_38 = arith.constant dense<0.000000e+00> : vector<8xf32>
      %145 = vector.multi_reduction <add>, %144, %cst_38 [1] : vector<8x8xf32> to vector<8xf32>
      %146 = vector.shape_cast %145 : vector<8xf32> to vector<8x1xf32>
      %147 = vector.broadcast %3 : f32 to vector<8x1xf32>
      %148 = arith.mulf %146, %147 : vector<8x1xf32>
      %149 = vector.broadcast %4 : f32 to vector<8x1xf32>
      %150 = arith.addf %148, %149 : vector<8x1xf32>
      %c0_39 = arith.constant 0 : index
      %c0_40 = arith.constant 0 : index
      %151 = vector.load %arg11[%c0_39, %c0_40] : memref<8x1xf32, #tpu.memory_space<vmem>>, vector<8x1xf32>
      %c0_41 = arith.constant 0 : index
      %c0_42 = arith.constant 0 : index
      %152 = vector.load %arg12[%c0_41, %c0_42] : memref<8x1xf32, #tpu.memory_space<vmem>>, vector<8x1xf32>
      %153 = math.log %152 : vector<8x1xf32>
      %154 = arith.addf %151, %153 : vector<8x1xf32>
      %155 = arith.subf %154, %150 : vector<8x1xf32>
      %c0_43 = arith.constant 0 : index
      %c0_44 = arith.constant 0 : index
      %156 = vector.load %arg8[%c0_43, %c0_44] : memref<8x1xf32, #tpu.memory_space<vmem>>, vector<8x1xf32>
      tpu.vector_store %arg8[%c0_43, %c0_44], %155 {strides = array<i32>} : memref<8x1xf32, #tpu.memory_space<vmem>>, vector<8x1xf32>,
      %c0_45 = arith.constant 0 : index
      %c0_46 = arith.constant 0 : index
      %157 = vector.load %arg13[%c0_45, %c0_46] : memref<128x8xf32, #tpu.memory_space<vmem>>, vector<128x8xf32>
      %cst_47 = arith.constant dense<0.000000e+00> : vector<8x8xf32>
      %158 = tpu.matmul %25, %157, %cst_47 {dimension_numbers = #tpu.dot_dimension_numbers<[1], [0], [0], [1], [0, 0, 1, 1], [], []>} : vector<8x128xf32>, vector<128x8xf32>, vector<8x8xf32> -> vector<8x8xf32>
      %159 = vector.broadcast %3 : f32 to vector<8x8xf32>
      %160 = arith.mulf %158, %159 : vector<8x8xf32>
      %161 = vector.broadcast %4 : f32 to vector<8x8xf32>
      %162 = arith.addf %160, %161 : vector<8x8xf32>
      %cst_48 = arith.constant dense<0xFF800000> : vector<8xf32>
      %163 = vector.multi_reduction <maximumf>, %162, %cst_48 [1] : vector<8x8xf32> to vector<8xf32>
      %164 = vector.shape_cast %163 : vector<8xf32> to vector<8x1xf32>
      %165 = vector.broadcast %164 : vector<8x1xf32> to vector<8x8xf32>
      %166 = arith.subf %162, %165 : vector<8x8xf32>
      %167 = math.exp %166 : vector<8x8xf32>
      %cst_49 = arith.constant dense<0.000000e+00> : vector<8xf32>
      %168 = vector.multi_reduction <add>, %167, %cst_49 [1] : vector<8x8xf32> to vector<8xf32>
      %169 = vector.shape_cast %168 : vector<8xf32> to vector<8x1xf32>
      %170 = math.log %169 : vector<8x1xf32>
      %171 = arith.addf %164, %170 : vector<8x1xf32>
      %cst_50 = arith.constant 0.000000e+00 : f32
      %172 = vector.broadcast %cst_50 : f32 to vector<8x8xf32>
      %173 = arith.select %142, %162, %172 : vector<8x8xi1>, vector<8x8xf32>
      %cst_51 = arith.constant dense<0.000000e+00> : vector<8xf32>
      %174 = vector.multi_reduction <add>, %173, %cst_51 [1] : vector<8x8xf32> to vector<8xf32>
      %175 = vector.shape_cast %174 : vector<8xf32> to vector<8x1xf32>
      %176 = arith.subf %171, %175 : vector<8x1xf32>
      %c0_52 = arith.constant 0 : index
      %c0_53 = arith.constant 0 : index
      %177 = vector.load %arg9[%c0_52, %c0_53] : memref<8x1xf32, #tpu.memory_space<vmem>>, vector<8x1xf32>
      tpu.vector_store %arg9[%c0_52, %c0_53], %176 {strides = array<i32>} : memref<8x1xf32, #tpu.memory_space<vmem>>, vector<8x1xf32>,
      %178 = tpu.iota {dimensions = array<i32: 1>} : vector<8x8xi32>
      %179 = vector.broadcast %164 : vector<8x1xf32> to vector<8x8xf32>
      %180 = arith.cmpf oeq, %162, %179 : vector<8x8xf32>
      %c8_i32 = arith.constant 8 : i32
      %181 = vector.broadcast %c8_i32 : i32 to vector<8x8xi32>
      %182 = arith.select %180, %178, %181 : vector<8x8xi1>, vector<8x8xi32>
      %cst_54 = arith.constant dense<2147483647> : vector<8xi32>
      %183 = vector.multi_reduction <minsi>, %182, %cst_54 [1] : vector<8x8xi32> to vector<8xi32>
      %184 = vector.shape_cast %183 : vector<8xi32> to vector<8x1xi32>
      %185 = tpu.iota {dimensions = array<i32: 0>} : vector<8x1xi32>
      %186 = arith.cmpi eq, %184, %185 : vector<8x1xi32>
      %187 = arith.extui %186 : vector<8x1xi1> to vector<8x1xi32>
      %188 = arith.sitofp %187 : vector<8x1xi32> to vector<8x1xf32>
      %c0_55 = arith.constant 0 : index
      %c0_56 = arith.constant 0 : index
      %189 = vector.load %arg10[%c0_55, %c0_56] : memref<8x1xf32, #tpu.memory_space<vmem>>, vector<8x1xf32>
      tpu.vector_store %arg10[%c0_55, %c0_56], %188 {strides = array<i32>} : memref<8x1xf32, #tpu.memory_space<vmem>>, vector<8x1xf32>,
    } else {
    }
    return
  }
  func.func @transform_0(%arg0: i32, %arg1: memref<8xi32, #tpu.memory_space<smem>>) -> (i32, i32) {
    %c0_i32 = arith.constant 0 : i32
    %c0_i32_0 = arith.constant 0 : i32
    return %c0_i32, %arg0 : i32, i32
  }
  func.func @transform_1(%arg0: i32, %arg1: memref<8xi32, #tpu.memory_space<smem>>) -> (i32, i32) {
    %c0_i32 = arith.constant 0 : i32
    %c0_i32_0 = arith.constant 0 : i32
    %c0_i32_1 = arith.constant 0 : i32
    return %c0_i32, %c0_i32_0 : i32, i32
  }
  func.func @transform_2(%arg0: i32, %arg1: memref<8xi32, #tpu.memory_space<smem>>) -> (i32, i32) {
    %c0_i32 = arith.constant 0 : i32
    %c0_i32_0 = arith.constant 0 : i32
    %c0_i32_1 = arith.constant 0 : i32
    return %c0_i32, %c0_i32_0 : i32, i32
  }
  func.func @transform_3(%arg0: i32, %arg1: memref<8xi32, #tpu.memory_space<smem>>) -> (i32, i32) {
    %c0_i32 = arith.constant 0 : i32
    %c0_i32_0 = arith.constant 0 : i32
    %c0_i32_1 = arith.constant 0 : i32
    return %c0_i32, %c0_i32_0 : i32, i32
  }
  func.func @transform_4(%arg0: i32, %arg1: memref<8xi32, #tpu.memory_space<smem>>) -> (i32, i32) {
    %c0_i32 = arith.constant 0 : i32
    %c0_i32_0 = arith.constant 0 : i32
    %c0_i32_1 = arith.constant 0 : i32
    return %c0_i32, %c0_i32_0 : i32, i32
  }
  func.func @transform_5(%arg0: i32, %arg1: memref<8xi32, #tpu.memory_space<smem>>) -> (i32, i32) {
    %c0_i32 = arith.constant 0 : i32
    %c0_i32_0 = arith.constant 0 : i32
    %c0_i32_1 = arith.constant 0 : i32
    return %c0_i32, %c0_i32_0 : i32, i32
  }
  func.func @transform_6(%arg0: i32, %arg1: memref<8xi32, #tpu.memory_space<smem>>) -> (i32, i32) {
    %c0_i32 = arith.constant 0 : i32
    %c0_i32_0 = arith.constant 0 : i32
    %c0_i32_1 = arith.constant 0 : i32
    return %c0_i32, %c0_i32_0 : i32, i32
  }
  func.func @transform_7(%arg0: i32, %arg1: memref<8xi32, #tpu.memory_space<smem>>) -> (i32, i32) {
    %c0_i32 = arith.constant 0 : i32
    %c0_i32_0 = arith.constant 0 : i32
    %c0_i32_1 = arith.constant 0 : i32
    return %c0_i32, %c0_i32_0 : i32, i32
  }
  func.func @transform_8(%arg0: i32, %arg1: memref<8xi32, #tpu.memory_space<smem>>) -> (i32, i32) {
    %c0_i32 = arith.constant 0 : i32
    %c0_i32_0 = arith.constant 0 : i32
    %c0_i32_1 = arith.constant 0 : i32
    return %c0_i32, %c0_i32_0 : i32, i32
  }
}

</mosaic_0001>

<llo_original>
// kernel: mp_balance_forward.1
$region0: #{mp_balance_forward.1}
  #allocation0 [shape = 'u32[]', space=smem, size = 0x4, offset = 0x4, fixed_abs, tag = 'smem constant byte address 0x4 - core index']
  #allocation1 [shape = 'u32[144,128]{1,0:T(1,128)}', space=vmem, size = 0x12000, scoped, tag = 'internal scratch']
  #allocation2 [shape = 'f32[8,1]{1,0:T(8,128)}', space=vmem, size = 0x1000, scoped, tag = 'scratch operand']
  #allocation3 [shape = 'f32[8,1]{1,0:T(8,128)}', space=vmem, size = 0x1000, scoped, tag = 'scratch operand']
  #allocation4 [shape = 'f32[128,8]{1,0:T(8,128)}', space=vmem, size = 0x10000, scoped, tag = 'scratch operand']
  #allocation5 [shape = 's32[1]{0}', space=sflag, size = 0x4, scoped, tag = 'scoped memory for mp_balance_forward.1']
  #allocation6 [shape = 'u8[512]{0}', space=smem, size = 0x200, scoped, tag = 'prefetched SMEM operand 0']
  #allocation7 [shape = 'f32[1,1]{1,0:T(1,128)S(6)}', space=smem, size = 0x200, scoped, tag = 'scoped memory for mp_balance_forward.1']
  #allocation8 [shape = 'f32[1,1]{1,0:T(1,128)S(6)}', space=smem, size = 0x200, scoped, tag = 'scoped memory for mp_balance_forward.1']
  %s0 = inlined_call_operand.vmem [shape: s32[8], index: 0, kind: input, shape index: {}, may-alias: {0,4}]
  %s1 = inlined_call_operand.vmem [shape: f32[128,512], index: 1, kind: input, shape index: {}]
  %s2 = inlined_call_operand.vmem [shape: f32[8,128], index: 2, kind: input, shape index: {}]
  %s3 = inlined_call_operand.vmem [shape: f32[8,128], index: 3, kind: input, shape index: {}]
  %s4 = inlined_call_operand.vmem [shape: s32[1,8], index: 4, kind: input, shape index: {}, may-alias: {0,4}]
  %s5 = inlined_call_operand.<no memory space> [shape: f32[1,1], index: 5, kind: input, shape index: {}]
  %s6 = inlined_call_operand.<no memory space> [shape: f32[1,1], index: 6, kind: input, shape index: {}]
  %s7 = inlined_call_operand.vmem [shape: f32[8,1], index: 7, kind: output, shape index: {0}]
  %s8 = inlined_call_operand.vmem [shape: f32[8,1], index: 8, kind: output, shape index: {1}]
  %s9 = inlined_call_operand.vmem [shape: f32[8,1], index: 9, kind: output, shape index: {2}]
  %10 = xla_tuple %s7, %s8, %s9
  %s11 = sld [smem:[#allocation0]]
  $region58: #{mp_balance_forward.1} parent=0
    _
  %s13 = ssub.s32 1, %s11
  %s14 = scalar_select 0, %s13, %s11
  %s15 = sshll.u32 %s0, 4
  %s16 = int_to_ptr.vmem [resolvable:$true] %s15
  %18 = dma.vmem_to_smem %s16, 16, [#allocation6], [#allocation5]
  %19 = sst [smem:[#allocation7]] %s5
  %20 = sst [smem:[#allocation8]] %s6
  %21 = dma.done [#allocation5], 16
  %22 = sfence
  // Predicated region
  $region2: #{mp_balance_forward.1} parent=0 // pred_check
    _
  $region3: #{mp_balance_forward.1} parent=0 // pred_check_branch
    %24 = sbr.rel (0) target = $region5
  $region4: #{mp_balance_forward.1} parent=0 // pred_region
    _
  $region5: #{mp_balance_forward.1} parent=0 // pred_fallthru
    _
  // Predicated region
  $region6: #{mp_balance_forward.1} parent=0 // pred_check
    _
  $region7: #{mp_balance_forward.1} parent=0 // pred_check_branch
    %26 = sbr.rel (0) target = $region9
  $region8: #{mp_balance_forward.1} parent=0 // pred_region
    _
  $region9: #{mp_balance_forward.1} parent=0 // pred_fallthru
    _
  // Predicated region
  $region10: #{mp_balance_forward.1} parent=0 // pred_check
    _
  $region11: #{mp_balance_forward.1} parent=0 // pred_check_branch
    %28 = sbr.rel (0) target = $region13
  $region12: #{mp_balance_forward.1} parent=0 // pred_region
    _
  $region13: #{mp_balance_forward.1} parent=0 // pred_fallthru
    _
  // Predicated region
  $region14: #{mp_balance_forward.1} parent=0 // pred_check
    _
  $region15: #{mp_balance_forward.1} parent=0 // pred_check_branch
    %30 = sbr.rel (0) target = $region17
  $region16: #{mp_balance_forward.1} parent=0 // pred_region
    _
  $region17: #{mp_balance_forward.1} parent=0 // pred_fallthru
    _
  // Predicated region
  $region18: #{mp_balance_forward.1} parent=0 // pred_check
    _
  $region19: #{mp_balance_forward.1} parent=0 // pred_check_branch
    %32 = sbr.rel (0) target = $region21
  $region20: #{mp_balance_forward.1} parent=0 // pred_region
    _
  $region21: #{mp_balance_forward.1} parent=0 // pred_fallthru
    _
  // Predicated region
  $region22: #{mp_balance_forward.1} parent=0 // pred_check
    _
  $region23: #{mp_balance_forward.1} parent=0 // pred_check_branch
    %34 = sbr.rel (0) target = $region25
  $region24: #{mp_balance_forward.1} parent=0 // pred_region
    _
  $region25: #{mp_balance_forward.1} parent=0 // pred_fallthru
    _
  %p35 = scmp.eq.s32.totalorder 0, 0
  // Predicated region
  $region26: #{mp_balance_forward.1} parent=0 // pred_check
    %p36 = pneg %p35
  $region27: #{mp_balance_forward.1} parent=0 // pred_check_branch
    %38 = sbr.rel (%p36) target = $region29
  $region28: #{mp_balance_forward.1} parent=0 // pred_region
    %vm39 = vcmask 7168
    %40 = vst.msk [vmem:[#allocation2] sm:$0xff] %vm39, -inf
    %41 = vst.msk [vmem:[#allocation3] sm:$0xff] %vm39, 0.0
    %vm42 = vcmask 64512
    %43 = vst.msk [vmem:[#allocation4] sm:$0xff] %vm42, 0.0
    %44 = vst.msk [vmem:[#allocation4 + $0x8] sm:$0xff] %vm42, 0.0
    %45 = vst.msk [vmem:[#allocation4 + $0x10] sm:$0xff] %vm42, 0.0
    %46 = vst.msk [vmem:[#allocation4 + $0x18] sm:$0xff] %vm42, 0.0
    %47 = vst.msk [vmem:[#allocation4 + $0x20] sm:$0xff] %vm42, 0.0
    %48 = vst.msk [vmem:[#allocation4 + $0x28] sm:$0xff] %vm42, 0.0
    %49 = vst.msk [vmem:[#allocation4 + $0x30] sm:$0xff] %vm42, 0.0
    %50 = vst.msk [vmem:[#allocation4 + $0x38] sm:$0xff] %vm42, 0.0
    %51 = vst.msk [vmem:[#allocation4 + $0x40] sm:$0xff] %vm42, 0.0
    %52 = vst.msk [vmem:[#allocation4 + $0x48] sm:$0xff] %vm42, 0.0
    %53 = vst.msk [vmem:[#allocation4 + $0x50] sm:$0xff] %vm42, 0.0
    %54 = vst.msk [vmem:[#allocation4 + $0x58] sm:$0xff] %vm42, 0.0
    %55 = vst.msk [vmem:[#allocation4 + $0x60] sm:$0xff] %vm42, 0.0
    %56 = vst.msk [vmem:[#allocation4 + $0x68] sm:$0xff] %vm42, 0.0
    %57 = vst.msk [vmem:[#allocation4 + $0x70] sm:$0xff] %vm42, 0.0
    %58 = vst.msk [vmem:[#allocation4 + $0x78] sm:$0xff] %vm42, 0.0
  $region29: #{mp_balance_forward.1} parent=0 // pred_fallthru
    _
  %s59 = sld [smem:[#allocation7]]
  %s60 = sld [smem:[#allocation8]]
  %v61 = vlaneseq
  %v62 = vand.u32 %v61, 127
  %v63 = vadd.s32 %v62, 128
  %v64 = vadd.s32 %v62, 256
  %v65 = vadd.s32 %v62, 384
  %s66 = smul.u32 0, 512
  %v67 = vstv %s66
  %v68 = vadd.s32 %v62, %v67
  %v69 = vadd.s32 %v63, %v67
  %v70 = vadd.s32 %v64, %v67
  %v71 = vadd.s32 %v65, %v67
  %vm72 = vcmp.lt.s32.totalorder %v68, 512
  %vm73 = vcmp.lt.s32.totalorder %v69, 512
  %vm74 = vcmp.lt.s32.totalorder %v70, 512
  %vm75 = vcmp.lt.s32.totalorder %v71, 512
  %v76 = vld [vmem:[%s1] sm:$0xff]
  %v77 = vld [vmem:[%s1 + $0x8] sm:$0xff]
  %v78 = vld [vmem:[%s1 + $0x10] sm:$0xff]
  %v79 = vld [vmem:[%s1 + $0x18] sm:$0xff]
  %v80 = vld [vmem:[%s1 + $0x20] sm:$0xff]
  %v81 = vld [vmem:[%s1 + $0x28] sm:$0xff]
  %v82 = vld [vmem:[%s1 + $0x30] sm:$0xff]
  %v83 = vld [vmem:[%s1 + $0x38] sm:$0xff]
  %v84 = vld [vmem:[%s1 + $0x40] sm:$0xff]
  %v85 = vld [vmem:[%s1 + $0x48] sm:$0xff]
  %v86 = vld [vmem:[%s1 + $0x50] sm:$0xff]
  %v87 = vld [vmem:[%s1 + $0x58] sm:$0xff]
  %v88 = vld [vmem:[%s1 + $0x60] sm:$0xff]
  %v89 = vld [vmem:[%s1 + $0x68] sm:$0xff]
  %v90 = vld [vmem:[%s1 + $0x70] sm:$0xff]
  %v91 = vld [vmem:[%s1 + $0x78] sm:$0xff]
  %v92 = vld [vmem:[%s1 + $0x80] sm:$0xff]
  %v93 = vld [vmem:[%s1 + $0x88] sm:$0xff]
  %v94 = vld [vmem:[%s1 + $0x90] sm:$0xff]
  %v95 = vld [vmem:[%s1 + $0x98] sm:$0xff]
  %v96 = vld [vmem:[%s1 + $0xa0] sm:$0xff]
  %v97 = vld [vmem:[%s1 + $0xa8] sm:$0xff]
  %v98 = vld [vmem:[%s1 + $0xb0] sm:$0xff]
  %v99 = vld [vmem:[%s1 + $0xb8] sm:$0xff]
  %v100 = vld [vmem:[%s1 + $0xc0] sm:$0xff]
  %v101 = vld [vmem:[%s1 + $0xc8] sm:$0xff]
  %v102 = vld [vmem:[%s1 + $0xd0] sm:$0xff]
  %v103 = vld [vmem:[%s1 + $0xd8] sm:$0xff]
  %v104 = vld [vmem:[%s1 + $0xe0] sm:$0xff]
  %v105 = vld [vmem:[%s1 + $0xe8] sm:$0xff]
  %v106 = vld [vmem:[%s1 + $0xf0] sm:$0xff]
  %v107 = vld [vmem:[%s1 + $0xf8] sm:$0xff]
  %v108 = vld [vmem:[%s1 + $0x100] sm:$0xff]
  %v109 = vld [vmem:[%s1 + $0x108] sm:$0xff]
  %v110 = vld [vmem:[%s1 + $0x110] sm:$0xff]
  %v111 = vld [vmem:[%s1 + $0x118] sm:$0xff]
  %v112 = vld [vmem:[%s1 + $0x120] sm:$0xff]
  %v113 = vld [vmem:[%s1 + $0x128] sm:$0xff]
  %v114 = vld [vmem:[%s1 + $0x130] sm:$0xff]
  %v115 = vld [vmem:[%s1 + $0x138] sm:$0xff]
  %v116 = vld [vmem:[%s1 + $0x140] sm:$0xff]
  %v117 = vld [vmem:[%s1 + $0x148] sm:$0xff]
  %v118 = vld [vmem:[%s1 + $0x150] sm:$0xff]
  %v119 = vld [vmem:[%s1 + $0x158] sm:$0xff]
  %v120 = vld [vmem:[%s1 + $0x160] sm:$0xff]
  %v121 = vld [vmem:[%s1 + $0x168] sm:$0xff]
  %v122 = vld [vmem:[%s1 + $0x170] sm:$0xff]
  %v123 = vld [vmem:[%s1 + $0x178] sm:$0xff]
  %v124 = vld [vmem:[%s1 + $0x180] sm:$0xff]
  %v125 = vld [vmem:[%s1 + $0x188] sm:$0xff]
  %v126 = vld [vmem:[%s1 + $0x190] sm:$0xff]
  %v127 = vld [vmem:[%s1 + $0x198] sm:$0xff]
  %v128 = vld [vmem:[%s1 + $0x1a0] sm:$0xff]
  %v129 = vld [vmem:[%s1 + $0x1a8] sm:$0xff]
  %v130 = vld [vmem:[%s1 + $0x1b0] sm:$0xff]
  %v131 = vld [vmem:[%s1 + $0x1b8] sm:$0xff]
  %v132 = vld [vmem:[%s1 + $0x1c0] sm:$0xff]
  %v133 = vld [vmem:[%s1 + $0x1c8] sm:$0xff]
  %v134 = vld [vmem:[%s1 + $0x1d0] sm:$0xff]
  %v135 = vld [vmem:[%s1 + $0x1d8] sm:$0xff]
  %v136 = vld [vmem:[%s1 + $0x1e0] sm:$0xff]
  %v137 = vld [vmem:[%s1 + $0x1e8] sm:$0xff]
  %v138 = vld [vmem:[%s1 + $0x1f0] sm:$0xff]
  %v139 = vld [vmem:[%s1 + $0x1f8] sm:$0xff]
  %v140 = vsel %vm72, 1, 0
  %v141 = vsel %vm73, 1, 0
  %v142 = vsel %vm74, 1, 0
  %v143 = vsel %vm75, 1, 0
  %vm144 = vcmp.eq.s32.totalorder %v140, 1
  %vm145 = vcmp.eq.s32.totalorder %v141, 1
  %vm146 = vcmp.eq.s32.totalorder %v142, 1
  %vm147 = vcmp.eq.s32.totalorder %v143, 1
  %v148 = vsel %vm144, %v76, 0.0
  %v149 = vsel %vm145, %v77, 0.0
  %v150 = vsel %vm146, %v78, 0.0
  %v151 = vsel %vm147, %v79, 0.0
  %v152 = vsel %vm144, %v80, 0.0
  %v153 = vsel %vm145, %v81, 0.0
  %v154 = vsel %vm146, %v82, 0.0
  %v155 = vsel %vm147, %v83, 0.0
  %v156 = vsel %vm144, %v84, 0.0
  %v157 = vsel %vm145, %v85, 0.0
  %v158 = vsel %vm146, %v86, 0.0
  %v159 = vsel %vm147, %v87, 0.0
  %v160 = vsel %vm144, %v88, 0.0
  %v161 = vsel %vm145, %v89, 0.0
  %v162 = vsel %vm146, %v90, 0.0
  %v163 = vsel %vm147, %v91, 0.0
  %v164 = vsel %vm144, %v92, 0.0
  %v165 = vsel %vm145, %v93, 0.0
  %v166 = vsel %vm146, %v94, 0.0
  %v167 = vsel %vm147, %v95, 0.0
  %v168 = vsel %vm144, %v96, 0.0
  %v169 = vsel %vm145, %v97, 0.0
  %v170 = vsel %vm146, %v98, 0.0
  %v171 = vsel %vm147, %v99, 0.0
  %v172 = vsel %vm144, %v100, 0.0
  %v173 = vsel %vm145, %v101, 0.0
  %v174 = vsel %vm146, %v102, 0.0
  %v175 = vsel %vm147, %v103, 0.0
  %v176 = vsel %vm144, %v104, 0.0
  %v177 = vsel %vm145, %v105, 0.0
  %v178 = vsel %vm146, %v106, 0.0
  %v179 = vsel %vm147, %v107, 0.0
  %v180 = vsel %vm144, %v108, 0.0
  %v181 = vsel %vm145, %v109, 0.0
  %v182 = vsel %vm146, %v110, 0.0
  %v183 = vsel %vm147, %v111, 0.0
  %v184 = vsel %vm144, %v112, 0.0
  %v185 = vsel %vm145, %v113, 0.0
  %v186 = vsel %vm146, %v114, 0.0
  %v187 = vsel %vm147, %v115, 0.0
  %v188 = vsel %vm144, %v116, 0.0
  %v189 = vsel %vm145, %v117, 0.0
  %v190 = vsel %vm146, %v118, 0.0
  %v191 = vsel %vm147, %v119, 0.0
  %v192 = vsel %vm144, %v120, 0.0
  %v193 = vsel %vm145, %v121, 0.0
  %v194 = vsel %vm146, %v122, 0.0
  %v195 = vsel %vm147, %v123, 0.0
  %v196 = vsel %vm144, %v124, 0.0
  %v197 = vsel %vm145, %v125, 0.0
  %v198 = vsel %vm146, %v126, 0.0
  %v199 = vsel %vm147, %v127, 0.0
  %v200 = vsel %vm144, %v128, 0.0
  %v201 = vsel %vm145, %v129, 0.0
  %v202 = vsel %vm146, %v130, 0.0
  %v203 = vsel %vm147, %v131, 0.0
  %v204 = vsel %vm144, %v132, 0.0
  %v205 = vsel %vm145, %v133, 0.0
  %v206 = vsel %vm146, %v134, 0.0
  %v207 = vsel %vm147, %v135, 0.0
  %v208 = vsel %vm144, %v136, 0.0
  %v209 = vsel %vm145, %v137, 0.0
  %v210 = vsel %vm146, %v138, 0.0
  %v211 = vsel %vm147, %v139, 0.0
  %v212 = vmul.f32 %v148, %v148
  %v213 = vmul.f32 %v149, %v149
  %v214 = vmul.f32 %v150, %v150
  %v215 = vmul.f32 %v151, %v151
  %v216 = vmul.f32 %v152, %v152
  %v217 = vmul.f32 %v153, %v153
  %v218 = vmul.f32 %v154, %v154
  %v219 = vmul.f32 %v155, %v155
  %v220 = vmul.f32 %v156, %v156
  %v221 = vmul.f32 %v157, %v157
  %v222 = vmul.f32 %v158, %v158
  %v223 = vmul.f32 %v159, %v159
  %v224 = vmul.f32 %v160, %v160
  %v225 = vmul.f32 %v161, %v161
  %v226 = vmul.f32 %v162, %v162
  %v227 = vmul.f32 %v163, %v163
  %v228 = vmul.f32 %v164, %v164
  %v229 = vmul.f32 %v165, %v165
  %v230 = vmul.f32 %v166, %v166
  %v231 = vmul.f32 %v167, %v167
  %v232 = vmul.f32 %v168, %v168
  %v233 = vmul.f32 %v169, %v169
  %v234 = vmul.f32 %v170, %v170
  %v235 = vmul.f32 %v171, %v171
  %v236 = vmul.f32 %v172, %v172
  %v237 = vmul.f32 %v173, %v173
  %v238 = vmul.f32 %v174, %v174
  %v239 = vmul.f32 %v175, %v175
  %v240 = vmul.f32 %v176, %v176
  %v241 = vmul.f32 %v177, %v177
  %v242 = vmul.f32 %v178, %v178
  %v243 = vmul.f32 %v179, %v179
  %v244 = vmul.f32 %v180, %v180
  %v245 = vmul.f32 %v181, %v181
  %v246 = vmul.f32 %v182, %v182
  %v247 = vmul.f32 %v183, %v183
  %v248 = vmul.f32 %v184, %v184
  %v249 = vmul.f32 %v185, %v185
  %v250 = vmul.f32 %v186, %v186
  %v251 = vmul.f32 %v187, %v187
  %v252 = vmul.f32 %v188, %v188
  %v253 = vmul.f32 %v189, %v189
  %v254 = vmul.f32 %v190, %v190
  %v255 = vmul.f32 %v191, %v191
  %v256 = vmul.f32 %v192, %v192
  %v257 = vmul.f32 %v193, %v193
  %v258 = vmul.f32 %v194, %v194
  %v259 = vmul.f32 %v195, %v195
  %v260 = vmul.f32 %v196, %v196
  %v261 = vmul.f32 %v197, %v197
  %v262 = vmul.f32 %v198, %v198
  %v263 = vmul.f32 %v199, %v199
  %v264 = vmul.f32 %v200, %v200
  %v265 = vmul.f32 %v201, %v201
  %v266 = vmul.f32 %v202, %v202
  %v267 = vmul.f32 %v203, %v203
  %v268 = vmul.f32 %v204, %v204
  %v269 = vmul.f32 %v205, %v205
  %v270 = vmul.f32 %v206, %v206
  %v271 = vmul.f32 %v207, %v207
  %v272 = vmul.f32 %v208, %v208
  %v273 = vmul.f32 %v209, %v209
  %v274 = vmul.f32 %v210, %v210
  %v275 = vmul.f32 %v211, %v211
  %v276 = vadd.f32 %v212, %v216
  %v277 = vadd.f32 %v276, %v220
  %v278 = vadd.f32 %v277, %v224
  %v279 = vadd.f32 %v278, %v228
  %v280 = vadd.f32 %v279, %v232
  %v281 = vadd.f32 %v280, %v236
  %v282 = vadd.f32 %v281, %v240
  %v283 = vadd.f32 %v282, %v244
  %v284 = vadd.f32 %v283, %v248
  %v285 = vadd.f32 %v284, %v252
  %v286 = vadd.f32 %v285, %v256
  %v287 = vadd.f32 %v286, %v260
  %v288 = vadd.f32 %v287, %v264
  %v289 = vadd.f32 %v288, %v268
  %v290 = vadd.f32 %v289, %v272
  %v291 = vrot.slane %v290, 4
  %v292 = vadd.f32 %v290, %v291
  %v293 = vrot.slane %v292, 2
  %v294 = vadd.f32 %v292, %v293
  %v295 = vrot.slane %v294, 1
  %v296 = vadd.f32 %v294, %v295
  %v297 = vadd.f32 %v213, %v217
  %v298 = vadd.f32 %v297, %v221
  %v299 = vadd.f32 %v298, %v225
  %v300 = vadd.f32 %v299, %v229
  %v301 = vadd.f32 %v300, %v233
  %v302 = vadd.f32 %v301, %v237
  %v303 = vadd.f32 %v302, %v241
  %v304 = vadd.f32 %v303, %v245
  %v305 = vadd.f32 %v304, %v249
  %v306 = vadd.f32 %v305, %v253
  %v307 = vadd.f32 %v306, %v257
  %v308 = vadd.f32 %v307, %v261
  %v309 = vadd.f32 %v308, %v265
  %v310 = vadd.f32 %v309, %v269
  %v311 = vadd.f32 %v310, %v273
  %v312 = vrot.slane %v311, 4
  %v313 = vadd.f32 %v311, %v312
  %v314 = vrot.slane %v313, 2
  %v315 = vadd.f32 %v313, %v314
  %v316 = vrot.slane %v315, 1
  %v317 = vadd.f32 %v315, %v316
  %v318 = vadd.f32 %v214, %v218
  %v319 = vadd.f32 %v318, %v222
  %v320 = vadd.f32 %v319, %v226
  %v321 = vadd.f32 %v320, %v230
  %v322 = vadd.f32 %v321, %v234
  %v323 = vadd.f32 %v322, %v238
  %v324 = vadd.f32 %v323, %v242
  %v325 = vadd.f32 %v324, %v246
  %v326 = vadd.f32 %v325, %v250
  %v327 = vadd.f32 %v326, %v254
  %v328 = vadd.f32 %v327, %v258
  %v329 = vadd.f32 %v328, %v262
  %v330 = vadd.f32 %v329, %v266
  %v331 = vadd.f32 %v330, %v270
  %v332 = vadd.f32 %v331, %v274
  %v333 = vrot.slane %v332, 4
  %v334 = vadd.f32 %v332, %v333
  %v335 = vrot.slane %v334, 2
  %v336 = vadd.f32 %v334, %v335
  %v337 = vrot.slane %v336, 1
  %v338 = vadd.f32 %v336, %v337
  %v339 = vadd.f32 %v215, %v219
  %v340 = vadd.f32 %v339, %v223
  %v341 = vadd.f32 %v340, %v227
  %v342 = vadd.f32 %v341, %v231
  %v343 = vadd.f32 %v342, %v235
  %v344 = vadd.f32 %v343, %v239
  %v345 = vadd.f32 %v344, %v243
  %v346 = vadd.f32 %v345, %v247
  %v347 = vadd.f32 %v346, %v251
  %v348 = vadd.f32 %v347, %v255
  %v349 = vadd.f32 %v348, %v259
  %v350 = vadd.f32 %v349, %v263
  %v351 = vadd.f32 %v350, %v267
  %v352 = vadd.f32 %v351, %v271
  %v353 = vadd.f32 %v352, %v275
  %v354 = vrot.slane %v353, 4
  %v355 = vadd.f32 %v353, %v354
  %v356 = vrot.slane %v355, 2
  %v357 = vadd.f32 %v355, %v356
  %v358 = vrot.slane %v357, 1
  %v359 = vadd.f32 %v357, %v358
  %v360 = vmax.f32 %v296, 1e-24
  %v361 = vmax.f32 %v317, 1e-24
  %v362 = vmax.f32 %v338, 1e-24
  %v363 = vmax.f32 %v359, 1e-24
  %v364 = vrsqrt.pop %v360
  %v365 = vrsqrt.pop %v361
  %v366 = vrsqrt.pop %v362
  %v367 = vrsqrt.pop %v363
  %v368 = vmul.f32 %v148, %v364
  %v369 = vmul.f32 %v149, %v365
  %v370 = vmul.f32 %v150, %v366
  %v371 = vmul.f32 %v151, %v367
  %v372 = vmul.f32 %v152, %v364
  %v373 = vmul.f32 %v153, %v365
  %v374 = vmul.f32 %v154, %v366
  %v375 = vmul.f32 %v155, %v367
  %v376 = vmul.f32 %v156, %v364
  %v377 = vmul.f32 %v157, %v365
  %v378 = vmul.f32 %v158, %v366
  %v379 = vmul.f32 %v159, %v367
  %v380 = vmul.f32 %v160, %v364
  %v381 = vmul.f32 %v161, %v365
  %v382 = vmul.f32 %v162, %v366
  %v383 = vmul.f32 %v163, %v367
  %v384 = vmul.f32 %v164, %v364
  %v385 = vmul.f32 %v165, %v365
  %v386 = vmul.f32 %v166, %v366
  %v387 = vmul.f32 %v167, %v367
  %v388 = vmul.f32 %v168, %v364
  %v389 = vmul.f32 %v169, %v365
  %v390 = vmul.f32 %v170, %v366
  %v391 = vmul.f32 %v171, %v367
  %v392 = vmul.f32 %v172, %v364
  %v393 = vmul.f32 %v173, %v365
  %v394 = vmul.f32 %v174, %v366
  %v395 = vmul.f32 %v175, %v367
  %v396 = vmul.f32 %v176, %v364
  %v397 = vmul.f32 %v177, %v365
  %v398 = vmul.f32 %v178, %v366
  %v399 = vmul.f32 %v179, %v367
  %v400 = vmul.f32 %v180, %v364
  %v401 = vmul.f32 %v181, %v365
  %v402 = vmul.f32 %v182, %v366
  %v403 = vmul.f32 %v183, %v367
  %v404 = vmul.f32 %v184, %v364
  %v405 = vmul.f32 %v185, %v365
  %v406 = vmul.f32 %v186, %v366
  %v407 = vmul.f32 %v187, %v367
  %v408 = vmul.f32 %v188, %v364
  %v409 = vmul.f32 %v189, %v365
  %v410 = vmul.f32 %v190, %v366
  %v411 = vmul.f32 %v191, %v367
  %v412 = vmul.f32 %v192, %v364
  %v413 = vmul.f32 %v193, %v365
  %v414 = vmul.f32 %v194, %v366
  %v415 = vmul.f32 %v195, %v367
  %v416 = vmul.f32 %v196, %v364
  %v417 = vmul.f32 %v197, %v365
  %v418 = vmul.f32 %v198, %v366
  %v419 = vmul.f32 %v199, %v367
  %v420 = vmul.f32 %v200, %v364
  %v421 = vmul.f32 %v201, %v365
  %v422 = vmul.f32 %v202, %v366
  %v423 = vmul.f32 %v203, %v367
  %v424 = vmul.f32 %v204, %v364
  %v425 = vmul.f32 %v205, %v365
  %v426 = vmul.f32 %v206, %v366
  %v427 = vmul.f32 %v207, %v367
  %v428 = vmul.f32 %v208, %v364
  %v429 = vmul.f32 %v209, %v365
  %v430 = vmul.f32 %v210, %v366
  %v431 = vmul.f32 %v211, %v367
  %v432 = vld [vmem:[%s2] sm:$0xff]
  %v433 = vld [vmem:[%s3] sm:$0xff]
  %434 = vmatprep.subr.mxu0 %v369
  %435 = vmatpush1.msra.mxu0 %v368
  %436 = vmatprep.subr.mxu0 %v373
  %437 = vmatpush1.msra.mxu0 %v372
  %438 = vmatprep.subr.mxu0 %v377
  %439 = vmatpush1.msra.mxu0 %v376
  %440 = vmatprep.subr.mxu0 %v381
  %441 = vmatpush1.msra.mxu0 %v380
  %442 = vmatprep.subr.mxu0 %v385
  %443 = vmatpush1.msra.mxu0 %v384
  %444 = vmatprep.subr.mxu0 %v389
  %445 = vmatpush1.msra.mxu0 %v388
  %446 = vmatprep.subr.mxu0 %v393
  %447 = vmatpush1.msra.mxu0 %v392
  %448 = vmatprep.subr.mxu0 %v397
  %449 = vmatpush1.msra.mxu0 %v396
  %450 = vmatprep.subr.mxu0 %v401
  %451 = vmatpush1.msra.mxu0 %v400
  %452 = vmatprep.subr.mxu0 %v405
  %453 = vmatpush1.msra.mxu0 %v404
  %454 = vmatprep.subr.mxu0 %v409
  %455 = vmatpush1.msra.mxu0 %v408
  %456 = vmatprep.subr.mxu0 %v413
  %457 = vmatpush1.msra.mxu0 %v412
  %458 = vmatprep.subr.mxu0 %v417
  %459 = vmatpush1.msra.mxu0 %v416
  %460 = vmatprep.subr.mxu0 %v421
  %461 = vmatpush1.msra.mxu0 %v420
  %462 = vmatprep.subr.mxu0 %v425
  %463 = vmatpush1.msra.mxu0 %v424
  %464 = vmatprep.subr.mxu0 %v429
  %465 = vmatpush1.msra.mxu0 %v428
  %466 = vmatprep.subr.mxu0 0.0
  %467 = vmatpush1.msra.mxu0 0.0
  %468 = vmatprep.subr.mxu0 0.0
  %469 = vmatpush1.msra.mxu0 0.0
  %470 = vmatprep.subr.mxu0 0.0
  %471 = vmatpush1.msra.mxu0 0.0
  %472 = vmatprep.subr.mxu0 0.0
  %473 = vmatpush1.msra.mxu0 0.0
  %474 = vmatprep.subr.mxu0 0.0
  %475 = vmatpush1.msra.mxu0 0.0
  %476 = vmatprep.subr.mxu0 0.0
  %477 = vmatpush1.msra.mxu0 0.0
  %478 = vmatprep.subr.mxu0 0.0
  %479 = vmatpush1.msra.mxu0 0.0
  %480 = vmatprep.subr.mxu0 0.0
  %481 = vmatpush1.msra.mxu0 0.0
  %482 = vmatprep.subr.mxu0 0.0
  %483 = vmatpush1.msra.mxu0 0.0
  %484 = vmatprep.subr.mxu0 0.0
  %485 = vmatpush1.msra.mxu0 0.0
  %486 = vmatprep.subr.mxu0 0.0
  %487 = vmatpush1.msra.mxu0 0.0
  %488 = vmatprep.subr.mxu0 0.0
  %489 = vmatpush1.msra.mxu0 0.0
  %490 = vmatprep.subr.mxu0 0.0
  %491 = vmatpush1.msra.mxu0 0.0
  %492 = vmatprep.subr.mxu0 0.0
  %493 = vmatpush1.msra.mxu0 0.0
  %494 = vmatprep.subr.mxu0 0.0
  %495 = vmatpush1.msra.mxu0 0.0
  %496 = vmatprep.subr.mxu0 0.0
  %497 = vmatpush1.msra.mxu0 0.0
  %498 = vmatprep.mubr.f32.mxu0 0.0
  %499 = vmatmul.mubr.f32.gmra.mrb[0].mxu0 %v432
  %v500 = vpop.f32.mrb[0].mxu0
  %v501 = vadd.f32 0.0, %v500
  %v502 = vpop.f32.mrb[0].mxu0
  %v503 = vadd.f32 0.0, %v502
  %504 = vdwg.mxu0
  %505 = vmatprep.subr.mxu0 %v371
  %506 = vmatpush1.msra.mxu0 %v370
  %507 = vmatprep.subr.mxu0 %v375
  %508 = vmatpush1.msra.mxu0 %v374
  %509 = vmatprep.subr.mxu0 %v379
  %510 = vmatpush1.msra.mxu0 %v378
  %511 = vmatprep.subr.mxu0 %v383
  %512 = vmatpush1.msra.mxu0 %v382
  %513 = vmatprep.subr.mxu0 %v387
  %514 = vmatpush1.msra.mxu0 %v386
  %515 = vmatprep.subr.mxu0 %v391
  %516 = vmatpush1.msra.mxu0 %v390
  %517 = vmatprep.subr.mxu0 %v395
  %518 = vmatpush1.msra.mxu0 %v394
  %519 = vmatprep.subr.mxu0 %v399
  %520 = vmatpush1.msra.mxu0 %v398
  %521 = vmatprep.subr.mxu0 %v403
  %522 = vmatpush1.msra.mxu0 %v402
  %523 = vmatprep.subr.mxu0 %v407
  %524 = vmatpush1.msra.mxu0 %v406
  %525 = vmatprep.subr.mxu0 %v411
  %526 = vmatpush1.msra.mxu0 %v410
  %527 = vmatprep.subr.mxu0 %v415
  %528 = vmatpush1.msra.mxu0 %v414
  %529 = vmatprep.subr.mxu0 %v419
  %530 = vmatpush1.msra.mxu0 %v418
  %531 = vmatprep.subr.mxu0 %v423
  %532 = vmatpush1.msra.mxu0 %v422
  %533 = vmatprep.subr.mxu0 %v427
  %534 = vmatpush1.msra.mxu0 %v426
  %535 = vmatprep.subr.mxu0 %v431
  %536 = vmatpush1.msra.mxu0 %v430
  %537 = vmatprep.subr.mxu0 0.0
  %538 = vmatpush1.msra.mxu0 0.0
  %539 = vmatprep.subr.mxu0 0.0
  %540 = vmatpush1.msra.mxu0 0.0
  %541 = vmatprep.subr.mxu0 0.0
  %542 = vmatpush1.msra.mxu0 0.0
  %543 = vmatprep.subr.mxu0 0.0
  %544 = vmatpush1.msra.mxu0 0.0
  %545 = vmatprep.subr.mxu0 0.0
  %546 = vmatpush1.msra.mxu0 0.0
  %547 = vmatprep.subr.mxu0 0.0
  %548 = vmatpush1.msra.mxu0 0.0
  %549 = vmatprep.subr.mxu0 0.0
  %550 = vmatpush1.msra.mxu0 0.0
  %551 = vmatprep.subr.mxu0 0.0
  %552 = vmatpush1.msra.mxu0 0.0
  %553 = vmatprep.subr.mxu0 0.0
  %554 = vmatpush1.msra.mxu0 0.0
  %555 = vmatprep.subr.mxu0 0.0
  %556 = vmatpush1.msra.mxu0 0.0
  %557 = vmatprep.subr.mxu0 0.0
  %558 = vmatpush1.msra.mxu0 0.0
  %559 = vmatprep.subr.mxu0 0.0
  %560 = vmatpush1.msra.mxu0 0.0
  %561 = vmatprep.subr.mxu0 0.0
  %562 = vmatpush1.msra.mxu0 0.0
  %563 = vmatprep.subr.mxu0 0.0
  %564 = vmatpush1.msra.mxu0 0.0
  %565 = vmatprep.subr.mxu0 0.0
  %566 = vmatpush1.msra.mxu0 0.0
  %567 = vmatprep.subr.mxu0 0.0
  %568 = vmatpush1.msra.mxu0 0.0
  %569 = vmatprep.mubr.f32.mxu0 0.0
  %570 = vmatmul.mubr.f32.gmra.mrb[0].mxu0 %v432
  %v571 = vpop.f32.mrb[0].mxu0
  %v572 = vadd.f32 0.0, %v571
  %v573 = vpop.f32.mrb[0].mxu0
  %v574 = vadd.f32 0.0, %v573
  %575 = vdwg.mxu0
  %576 = vmatprep.subr.mxu0 0.0
  %577 = vmatpush1.xpose.msra.mxu0 %v433
  %578 = vmatprep.subr.mxu0 0.0
  %579 = vmatpush1.xpose.msra.mxu0 0.0
  %580 = vmatprep.subr.mxu0 0.0
  %581 = vmatpush1.xpose.msra.mxu0 0.0
  %582 = vmatprep.subr.mxu0 0.0
  %583 = vmatpush1.xpose.msra.mxu0 0.0
  %584 = vmatprep.subr.mxu0 0.0
  %585 = vmatpush1.xpose.msra.mxu0 0.0
  %586 = vmatprep.subr.mxu0 0.0
  %587 = vmatpush1.xpose.msra.mxu0 0.0
  %588 = vmatprep.subr.mxu0 0.0
  %589 = vmatpush1.xpose.msra.mxu0 0.0
  %590 = vmatprep.subr.mxu0 0.0
  %591 = vmatpush1.xpose.msra.mxu0 0.0
  %592 = vmatprep.subr.mxu0 0.0
  %593 = vmatpush1.xpose.msra.mxu0 0.0
  %594 = vmatprep.subr.mxu0 0.0
  %595 = vmatpush1.xpose.msra.mxu0 0.0
  %596 = vmatprep.subr.mxu0 0.0
  %597 = vmatpush1.xpose.msra.mxu0 0.0
  %598 = vmatprep.subr.mxu0 0.0
  %599 = vmatpush1.xpose.msra.mxu0 0.0
  %600 = vmatprep.subr.mxu0 0.0
  %601 = vmatpush1.xpose.msra.mxu0 0.0
  %602 = vmatprep.subr.mxu0 0.0
  %603 = vmatpush1.xpose.msra.mxu0 0.0
  %604 = vmatprep.subr.mxu0 0.0
  %605 = vmatpush1.xpose.msra.mxu0 0.0
  %606 = vmatprep.subr.mxu0 0.0
  %607 = vmatpush1.xpose.msra.mxu0 0.0
  %608 = vmatprep.subr.mxu0 0.0
  %609 = vmatpush1.xpose.msra.mxu0 0.0
  %610 = vmatprep.subr.mxu0 0.0
  %611 = vmatpush1.xpose.msra.mxu0 0.0
  %612 = vmatprep.subr.mxu0 0.0
  %613 = vmatpush1.xpose.msra.mxu0 0.0
  %614 = vmatprep.subr.mxu0 0.0
  %615 = vmatpush1.xpose.msra.mxu0 0.0
  %616 = vmatprep.subr.mxu0 0.0
  %617 = vmatpush1.xpose.msra.mxu0 0.0
  %618 = vmatprep.subr.mxu0 0.0
  %619 = vmatpush1.xpose.msra.mxu0 0.0
  %620 = vmatprep.subr.mxu0 0.0
  %621 = vmatpush1.xpose.msra.mxu0 0.0
  %622 = vmatprep.subr.mxu0 0.0
  %623 = vmatpush1.xpose.msra.mxu0 0.0
  %624 = vmatprep.subr.mxu0 0.0
  %625 = vmatpush1.xpose.msra.mxu0 0.0
  %626 = vmatprep.subr.mxu0 0.0
  %627 = vmatpush1.xpose.msra.mxu0 0.0
  %628 = vmatprep.subr.mxu0 0.0
  %629 = vmatpush1.xpose.msra.mxu0 0.0
  %630 = vmatprep.subr.mxu0 0.0
  %631 = vmatpush1.xpose.msra.mxu0 0.0
  %632 = vmatprep.subr.mxu0 0.0
  %633 = vmatpush1.xpose.msra.mxu0 0.0
  %634 = vmatprep.subr.mxu0 0.0
  %635 = vmatpush1.xpose.msra.mxu0 0.0
  %636 = vmatprep.subr.mxu0 0.0
  %637 = vmatpush1.xpose.msra.mxu0 0.0
  %638 = vmatprep.subr.mxu0 0.0
  %639 = vmatpush1.xpose.msra.mxu0 0.0
  %640 = vmatprep.mubr.f32.mxu0 0.0
  %641 = vmatmul.mubr.f32.gmra.mrb[0].mxu0 %v432
  %v642 = vpop.f32.mrb[0].mxu0
  %v643 = vadd.f32 0.0, %v642
  %v644 = vpop.f32.mrb[0].mxu0
  %645 = vdwg.mxu0
  %s646 = sld [smem:[#allocation6]]
  %v647 = vstv %s646
  %vm648 = vcmp.eq.s32.totalorder %v68, %v647
  %vm649 = vcmp.eq.s32.totalorder %v69, %v647
  %vm650 = vcmp.eq.s32.totalorder %v70, %v647
  %vm651 = vcmp.eq.s32.totalorder %v71, %v647
  %v652 = vsel %vm648, 1, 0
  %v653 = vsel %vm649, 1, 0
  %v654 = vsel %vm650, 1, 0
  %v655 = vsel %vm651, 1, 0
  %vm656 = vcmp.eq.s32.totalorder %v652, 1
  %vm657 = vcmp.eq.s32.totalorder %v653, 1
  %vm658 = vcmp.eq.s32.totalorder %v654, 1
  %vm659 = vcmp.eq.s32.totalorder %v655, 1
  %661 = vset.pattern.permute.xlu0 0
  %662 = vperm.xlu0 %661, %v643
  %v663 = vpop.permute.xlu0 %662
  %v665 = vsel %vm656, %v663, %v501
  %v666 = vsel %vm657, %v663, %v503
  %v667 = vsel %vm658, %v663, %v572
  %v668 = vsel %vm659, %v663, %v574
  %s669 = sld [smem:[#allocation6 + $0x1]]
  %v670 = vstv %s669
  %vm671 = vcmp.eq.s32.totalorder %v68, %v670
  %vm672 = vcmp.eq.s32.totalorder %v69, %v670
  %vm673 = vcmp.eq.s32.totalorder %v70, %v670
  %vm674 = vcmp.eq.s32.totalorder %v71, %v670
  %v675 = vsel %vm671, 1, 0
  %v676 = vsel %vm672, 1, 0
  %v677 = vsel %vm673, 1, 0
  %v678 = vsel %vm674, 1, 0
  %vm679 = vcmp.eq.s32.totalorder %v675, 1
  %vm680 = vcmp.eq.s32.totalorder %v676, 1
  %vm681 = vcmp.eq.s32.totalorder %v677, 1
  %vm682 = vcmp.eq.s32.totalorder %v678, 1
  %683 = vset.pattern.permute.xlu0 1
  %684 = vperm.xlu0 %683, %v643
  %v685 = vpop.permute.xlu0 %684
  %v687 = vsel %vm679, %v685, %v665
  %v688 = vsel %vm680, %v685, %v666
  %v689 = vsel %vm681, %v685, %v667
  %v690 = vsel %vm682, %v685, %v668
  %s691 = sld [smem:[#allocation6 + $0x2]]
  %v692 = vstv %s691
  %vm693 = vcmp.eq.s32.totalorder %v68, %v692
  %vm694 = vcmp.eq.s32.totalorder %v69, %v692
  %vm695 = vcmp.eq.s32.totalorder %v70, %v692
  %vm696 = vcmp.eq.s32.totalorder %v71, %v692
  %v697 = vsel %vm693, 1, 0
  %v698 = vsel %vm694, 1, 0
  %v699 = vsel %vm695, 1, 0
  %v700 = vsel %vm696, 1, 0
  %vm701 = vcmp.eq.s32.totalorder %v697, 1
  %vm702 = vcmp.eq.s32.totalorder %v698, 1
  %vm703 = vcmp.eq.s32.totalorder %v699, 1
  %vm704 = vcmp.eq.s32.totalorder %v700, 1
  %705 = vset.pattern.permute.xlu0 2
  %706 = vperm.xlu0 %705, %v643
  %v707 = vpop.permute.xlu0 %706
  %v709 = vsel %vm701, %v707, %v687
  %v710 = vsel %vm702, %v707, %v688
  %v711 = vsel %vm703, %v707, %v689
  %v712 = vsel %vm704, %v707, %v690
  %s713 = sld [smem:[#allocation6 + $0x3]]
  %v714 = vstv %s713
  %vm715 = vcmp.eq.s32.totalorder %v68, %v714
  %vm716 = vcmp.eq.s32.totalorder %v69, %v714
  %vm717 = vcmp.eq.s32.totalorder %v70, %v714
  %vm718 = vcmp.eq.s32.totalorder %v71, %v714
  %v719 = vsel %vm715, 1, 0
  %v720 = vsel %vm716, 1, 0
  %v721 = vsel %vm717, 1, 0
  %v722 = vsel %vm718, 1, 0
  %vm723 = vcmp.eq.s32.totalorder %v719, 1
  %vm724 = vcmp.eq.s32.totalorder %v720, 1
  %vm725 = vcmp.eq.s32.totalorder %v721, 1
  %vm726 = vcmp.eq.s32.totalorder %v722, 1
  %727 = vset.pattern.permute.xlu0 3
  %728 = vperm.xlu0 %727, %v643
  %v729 = vpop.permute.xlu0 %728
  %v731 = vsel %vm723, %v729, %v709
  %v732 = vsel %vm724, %v729, %v710
  %v733 = vsel %vm725, %v729, %v711
  %v734 = vsel %vm726, %v729, %v712
  %s735 = sld [smem:[#allocation6 + $0x4]]
  %v736 = vstv %s735
  %vm737 = vcmp.eq.s32.totalorder %v68, %v736
  %vm738 = vcmp.eq.s32.totalorder %v69, %v736
  %vm739 = vcmp.eq.s32.totalorder %v70, %v736
  %vm740 = vcmp.eq.s32.totalorder %v71, %v736
  %v741 = vsel %vm737, 1, 0
  %v742 = vsel %vm738, 1, 0
  %v743 = vsel %vm739, 1, 0
  %v744 = vsel %vm740, 1, 0
  %vm745 = vcmp.eq.s32.totalorder %v741, 1
  %vm746 = vcmp.eq.s32.totalorder %v742, 1
  %vm747 = vcmp.eq.s32.totalorder %v743, 1
  %vm748 = vcmp.eq.s32.totalorder %v744, 1
  %749 = vset.pattern.permute.xlu0 4
  %750 = vperm.xlu0 %749, %v643
  %v751 = vpop.permute.xlu0 %750
  %v753 = vsel %vm745, %v751, %v731
  %v754 = vsel %vm746, %v751, %v732
  %v755 = vsel %vm747, %v751, %v733
  %v756 = vsel %vm748, %v751, %v734
  %s757 = sld [smem:[#allocation6 + $0x5]]
  %v758 = vstv %s757
  %vm759 = vcmp.eq.s32.totalorder %v68, %v758
  %vm760 = vcmp.eq.s32.totalorder %v69, %v758
  %vm761 = vcmp.eq.s32.totalorder %v70, %v758
  %vm762 = vcmp.eq.s32.totalorder %v71, %v758
  %v763 = vsel %vm759, 1, 0
  %v764 = vsel %vm760, 1, 0
  %v765 = vsel %vm761, 1, 0
  %v766 = vsel %vm762, 1, 0
  %vm767 = vcmp.eq.s32.totalorder %v763, 1
  %vm768 = vcmp.eq.s32.totalorder %v764, 1
  %vm769 = vcmp.eq.s32.totalorder %v765, 1
  %vm770 = vcmp.eq.s32.totalorder %v766, 1
  %771 = vset.pattern.permute.xlu0 5
  %772 = vperm.xlu0 %771, %v643
  %v773 = vpop.permute.xlu0 %772
  %v775 = vsel %vm767, %v773, %v753
  %v776 = vsel %vm768, %v773, %v754
  %v777 = vsel %vm769, %v773, %v755
  %v778 = vsel %vm770, %v773, %v756
  %s779 = sld [smem:[#allocation6 + $0x6]]
  %v780 = vstv %s779
  %vm781 = vcmp.eq.s32.totalorder %v68, %v780
  %vm782 = vcmp.eq.s32.totalorder %v69, %v780
  %vm783 = vcmp.eq.s32.totalorder %v70, %v780
  %vm784 = vcmp.eq.s32.totalorder %v71, %v780
  %v785 = vsel %vm781, 1, 0
  %v786 = vsel %vm782, 1, 0
  %v787 = vsel %vm783, 1, 0
  %v788 = vsel %vm784, 1, 0
  %vm789 = vcmp.eq.s32.totalorder %v785, 1
  %vm790 = vcmp.eq.s32.totalorder %v786, 1
  %vm791 = vcmp.eq.s32.totalorder %v787, 1
  %vm792 = vcmp.eq.s32.totalorder %v788, 1
  %793 = vset.pattern.permute.xlu0 6
  %794 = vperm.xlu0 %793, %v643
  %v795 = vpop.permute.xlu0 %794
  %v797 = vsel %vm789, %v795, %v775
  %v798 = vsel %vm790, %v795, %v776
  %v799 = vsel %vm791, %v795, %v777
  %v800 = vsel %vm792, %v795, %v778
  %s801 = sld [smem:[#allocation6 + $0x7]]
  %v802 = vstv %s801
  %vm803 = vcmp.eq.s32.totalorder %v68, %v802
  %vm804 = vcmp.eq.s32.totalorder %v69, %v802
  %vm805 = vcmp.eq.s32.totalorder %v70, %v802
  %vm806 = vcmp.eq.s32.totalorder %v71, %v802
  %v807 = vsel %vm803, 1, 0
  %v808 = vsel %vm804, 1, 0
  %v809 = vsel %vm805, 1, 0
  %v810 = vsel %vm806, 1, 0
  %vm811 = vcmp.eq.s32.totalorder %v807, 1
  %vm812 = vcmp.eq.s32.totalorder %v808, 1
  %vm813 = vcmp.eq.s32.totalorder %v809, 1
  %vm814 = vcmp.eq.s32.totalorder %v810, 1
  %815 = vset.pattern.permute.xlu0 7
  %816 = vperm.xlu0 %815, %v643
  %v817 = vpop.permute.xlu0 %816
  %v819 = vsel %vm811, %v817, %v797
  %v820 = vsel %vm812, %v817, %v798
  %v821 = vsel %vm813, %v817, %v799
  %v822 = vsel %vm814, %v817, %v800
  %v823 = vstv %s59
  %v824 = vmul.f32 %v819, %v823
  %v825 = vmul.f32 %v820, %v823
  %v826 = vmul.f32 %v821, %v823
  %v827 = vmul.f32 %v822, %v823
  %v828 = vstv %s60
  %v829 = vadd.f32 %v824, %v828
  %v830 = vadd.f32 %v825, %v828
  %v831 = vadd.f32 %v826, %v828
  %v832 = vadd.f32 %v827, %v828
  %v833 = vsel %vm144, %v829, -inf
  %v834 = vsel %vm145, %v830, -inf
  %v835 = vsel %vm146, %v831, -inf
  %v836 = vsel %vm147, %v832, -inf
  %v837 = vld [vmem:[#allocation2] sm:$0xff]
  %v838 = vmax.f32 %v833, %v834
  %v839 = vmax.f32 %v835, %v836
  %v840 = vmax.f32 %v838, %v839
  %841 = vmax.xlane.f32.xlu0 %v840
  %v842 = vpop.xlane.xlu0 %841
  %v843 = vmax.f32 %v837, %v842
  %v844 = vsub.f32 %v837, %v843
  %v845 = vmul.f32 %v844, 1.442695
  %v846 = vpow.pop %v845
  %v847 = vld [vmem:[#allocation3] sm:$0xff]
  %v848 = vmul.f32 %v846, %v847
  %850 = vset.pattern.permute.xlu0 0
  %851 = vperm.xlu0 %850, %v843
  %v852 = vpop.permute.xlu0 %851
  %v854 = vsub.f32 %v833, %v852
  %v855 = vsub.f32 %v834, %v852
  %v856 = vsub.f32 %v835, %v852
  %v857 = vsub.f32 %v836, %v852
  %v858 = vmul.f32 %v854, 1.442695
  %v859 = vpow.pop %v858
  %v860 = vmul.f32 %v855, 1.442695
  %v861 = vpow.pop %v860
  %v862 = vmul.f32 %v856, 1.442695
  %v863 = vpow.pop %v862
  %v864 = vmul.f32 %v857, 1.442695
  %v865 = vpow.pop %v864
  %v866 = vadd.f32 %v859, %v861
  %v867 = vadd.f32 %v866, %v863
  %v868 = vadd.f32 %v867, %v865
  %869 = vadd.xlane.f32.xlu0 %v868
  %v870 = vpop.xlane.xlu0 %869
  %v871 = vadd.f32 %v848, %v870
  %vm872 = vcmask 7168
  %873 = vst.msk [vmem:[#allocation3] sm:$0xff] %vm872, %v871
  %874 = vst.msk [vmem:[#allocation2] sm:$0xff] %vm872, %v843
  %v875 = vlaneseq
  %v876 = vshrl.u32 %v875, 7
  %v877 = vadd.s32 %v876, 8
  %v878 = vadd.s32 %v876, 16
  %v879 = vadd.s32 %v876, 24
  %v880 = vadd.s32 %v876, 32
  %v881 = vadd.s32 %v876, 40
  %v882 = vadd.s32 %v876, 48
  %v883 = vadd.s32 %v876, 56
  %v884 = vadd.s32 %v876, 64
  %v885 = vadd.s32 %v876, 72
  %v886 = vadd.s32 %v876, 80
  %v887 = vadd.s32 %v876, 88
  %v888 = vadd.s32 %v876, 96
  %v889 = vadd.s32 %v876, 104
  %v890 = vadd.s32 %v876, 112
  %v891 = vadd.s32 %v876, 120
  %v892 = vadd.s32 %v876, 128
  %v893 = vadd.s32 %v876, 136
  %v894 = vadd.s32 %v876, 144
  %v895 = vadd.s32 %v876, 152
  %v896 = vadd.s32 %v876, 160
  %v897 = vadd.s32 %v876, 168
  %v898 = vadd.s32 %v876, 176
  %v899 = vadd.s32 %v876, 184
  %v900 = vadd.s32 %v876, 192
  %v901 = vadd.s32 %v876, 200
  %v902 = vadd.s32 %v876, 208
  %v903 = vadd.s32 %v876, 216
  %v904 = vadd.s32 %v876, 224
  %v905 = vadd.s32 %v876, 232
  %v906 = vadd.s32 %v876, 240
  %v907 = vadd.s32 %v876, 248
  %v908 = vadd.s32 %v876, 256
  %v909 = vadd.s32 %v876, 264
  %v910 = vadd.s32 %v876, 272
  %v911 = vadd.s32 %v876, 280
  %v912 = vadd.s32 %v876, 288
  %v913 = vadd.s32 %v876, 296
  %v914 = vadd.s32 %v876, 304
  %v915 = vadd.s32 %v876, 312
  %v916 = vadd.s32 %v876, 320
  %v917 = vadd.s32 %v876, 328
  %v918 = vadd.s32 %v876, 336
  %v919 = vadd.s32 %v876, 344
  %v920 = vadd.s32 %v876, 352
  %v921 = vadd.s32 %v876, 360
  %v922 = vadd.s32 %v876, 368
  %v923 = vadd.s32 %v876, 376
  %v924 = vadd.s32 %v876, 384
  %v925 = vadd.s32 %v876, 392
  %v926 = vadd.s32 %v876, 400
  %v927 = vadd.s32 %v876, 408
  %v928 = vadd.s32 %v876, 416
  %v929 = vadd.s32 %v876, 424
  %v930 = vadd.s32 %v876, 432
  %v931 = vadd.s32 %v876, 440
  %v932 = vadd.s32 %v876, 448
  %v933 = vadd.s32 %v876, 456
  %v934 = vadd.s32 %v876, 464
  %v935 = vadd.s32 %v876, 472
  %v936 = vadd.s32 %v876, 480
  %v937 = vadd.s32 %v876, 488
  %v938 = vadd.s32 %v876, 496
  %v939 = vadd.s32 %v876, 504
  %v940 = vadd.s32 %v876, %v67
  %v941 = vadd.s32 %v877, %v67
  %v942 = vadd.s32 %v878, %v67
  %v943 = vadd.s32 %v879, %v67
  %v944 = vadd.s32 %v880, %v67
  %v945 = vadd.s32 %v881, %v67
  %v946 = vadd.s32 %v882, %v67
  %v947 = vadd.s32 %v883, %v67
  %v948 = vadd.s32 %v884, %v67
  %v949 = vadd.s32 %v885, %v67
  %v950 = vadd.s32 %v886, %v67
  %v951 = vadd.s32 %v887, %v67
  %v952 = vadd.s32 %v888, %v67
  %v953 = vadd.s32 %v889, %v67
  %v954 = vadd.s32 %v890, %v67
  %v955 = vadd.s32 %v891, %v67
  %v956 = vadd.s32 %v892, %v67
  %v957 = vadd.s32 %v893, %v67
  %v958 = vadd.s32 %v894, %v67
  %v959 = vadd.s32 %v895, %v67
  %v960 = vadd.s32 %v896, %v67
  %v961 = vadd.s32 %v897, %v67
  %v962 = vadd.s32 %v898, %v67
  %v963 = vadd.s32 %v899, %v67
  %v964 = vadd.s32 %v900, %v67
  %v965 = vadd.s32 %v901, %v67
  %v966 = vadd.s32 %v902, %v67
  %v967 = vadd.s32 %v903, %v67
  %v968 = vadd.s32 %v904, %v67
  %v969 = vadd.s32 %v905, %v67
  %v970 = vadd.s32 %v906, %v67
  %v971 = vadd.s32 %v907, %v67
  %v972 = vadd.s32 %v908, %v67
  %v973 = vadd.s32 %v909, %v67
  %v974 = vadd.s32 %v910, %v67
  %v975 = vadd.s32 %v911, %v67
  %v976 = vadd.s32 %v912, %v67
  %v977 = vadd.s32 %v913, %v67
  %v978 = vadd.s32 %v914, %v67
  %v979 = vadd.s32 %v915, %v67
  %v980 = vadd.s32 %v916, %v67
  %v981 = vadd.s32 %v917, %v67
  %v982 = vadd.s32 %v918, %v67
  %v983 = vadd.s32 %v919, %v67
  %v984 = vadd.s32 %v920, %v67
  %v985 = vadd.s32 %v921, %v67
  %v986 = vadd.s32 %v922, %v67
  %v987 = vadd.s32 %v923, %v67
  %v988 = vadd.s32 %v924, %v67
  %v989 = vadd.s32 %v925, %v67
  %v990 = vadd.s32 %v926, %v67
  %v991 = vadd.s32 %v927, %v67
  %v992 = vadd.s32 %v928, %v67
  %v993 = vadd.s32 %v929, %v67
  %v994 = vadd.s32 %v930, %v67
  %v995 = vadd.s32 %v931, %v67
  %v996 = vadd.s32 %v932, %v67
  %v997 = vadd.s32 %v933, %v67
  %v998 = vadd.s32 %v934, %v67
  %v999 = vadd.s32 %v935, %v67
  %v1000 = vadd.s32 %v936, %v67
  %v1001 = vadd.s32 %v937, %v67
  %v1002 = vadd.s32 %v938, %v67
  %v1003 = vadd.s32 %v939, %v67
  %v1004 = vld [vmem:[%s4] sm:$0x1]
  %v1005 = vlaneseq
  %v1006 = vshrl.u32 %v1005, 7
  %v1007 = vsub.s32 0, %v1006
  %v1008 = vrot.slane %v1004, %v1007
  %vm1009 = vcmp.eq.s32.totalorder %v940, %v1008
  %vm1010 = vcmp.eq.s32.totalorder %v941, %v1008
  %vm1011 = vcmp.eq.s32.totalorder %v942, %v1008
  %vm1012 = vcmp.eq.s32.totalorder %v943, %v1008
  %vm1013 = vcmp.eq.s32.totalorder %v944, %v1008
  %vm1014 = vcmp.eq.s32.totalorder %v945, %v1008
  %vm1015 = vcmp.eq.s32.totalorder %v946, %v1008
  %vm1016 = vcmp.eq.s32.totalorder %v947, %v1008
  %vm1017 = vcmp.eq.s32.totalorder %v948, %v1008
  %vm1018 = vcmp.eq.s32.totalorder %v949, %v1008
  %vm1019 = vcmp.eq.s32.totalorder %v950, %v1008
  %vm1020 = vcmp.eq.s32.totalorder %v951, %v1008
  %vm1021 = vcmp.eq.s32.totalorder %v952, %v1008
  %vm1022 = vcmp.eq.s32.totalorder %v953, %v1008
  %vm1023 = vcmp.eq.s32.totalorder %v954, %v1008
  %vm1024 = vcmp.eq.s32.totalorder %v955, %v1008
  %vm1025 = vcmp.eq.s32.totalorder %v956, %v1008
  %vm1026 = vcmp.eq.s32.totalorder %v957, %v1008
  %vm1027 = vcmp.eq.s32.totalorder %v958, %v1008
  %vm1028 = vcmp.eq.s32.totalorder %v959, %v1008
  %vm1029 = vcmp.eq.s32.totalorder %v960, %v1008
  %vm1030 = vcmp.eq.s32.totalorder %v961, %v1008
  %vm1031 = vcmp.eq.s32.totalorder %v962, %v1008
  %vm1032 = vcmp.eq.s32.totalorder %v963, %v1008
  %vm1033 = vcmp.eq.s32.totalorder %v964, %v1008
  %vm1034 = vcmp.eq.s32.totalorder %v965, %v1008
  %vm1035 = vcmp.eq.s32.totalorder %v966, %v1008
  %vm1036 = vcmp.eq.s32.totalorder %v967, %v1008
  %vm1037 = vcmp.eq.s32.totalorder %v968, %v1008
  %vm1038 = vcmp.eq.s32.totalorder %v969, %v1008
  %vm1039 = vcmp.eq.s32.totalorder %v970, %v1008
  %vm1040 = vcmp.eq.s32.totalorder %v971, %v1008
  %vm1041 = vcmp.eq.s32.totalorder %v972, %v1008
  %vm1042 = vcmp.eq.s32.totalorder %v973, %v1008
  %vm1043 = vcmp.eq.s32.totalorder %v974, %v1008
  %vm1044 = vcmp.eq.s32.totalorder %v975, %v1008
  %vm1045 = vcmp.eq.s32.totalorder %v976, %v1008
  %vm1046 = vcmp.eq.s32.totalorder %v977, %v1008
  %vm1047 = vcmp.eq.s32.totalorder %v978, %v1008
  %vm1048 = vcmp.eq.s32.totalorder %v979, %v1008
  %vm1049 = vcmp.eq.s32.totalorder %v980, %v1008
  %vm1050 = vcmp.eq.s32.totalorder %v981, %v1008
  %vm1051 = vcmp.eq.s32.totalorder %v982, %v1008
  %vm1052 = vcmp.eq.s32.totalorder %v983, %v1008
  %vm1053 = vcmp.eq.s32.totalorder %v984, %v1008
  %vm1054 = vcmp.eq.s32.totalorder %v985, %v1008
  %vm1055 = vcmp.eq.s32.totalorder %v986, %v1008
  %vm1056 = vcmp.eq.s32.totalorder %v987, %v1008
  %vm1057 = vcmp.eq.s32.totalorder %v988, %v1008
  %vm1058 = vcmp.eq.s32.totalorder %v989, %v1008
  %vm1059 = vcmp.eq.s32.totalorder %v990, %v1008
  %vm1060 = vcmp.eq.s32.totalorder %v991, %v1008
  %vm1061 = vcmp.eq.s32.totalorder %v992, %v1008
  %vm1062 = vcmp.eq.s32.totalorder %v993, %v1008
  %vm1063 = vcmp.eq.s32.totalorder %v994, %v1008
  %vm1064 = vcmp.eq.s32.totalorder %v995, %v1008
  %vm1065 = vcmp.eq.s32.totalorder %v996, %v1008
  %vm1066 = vcmp.eq.s32.totalorder %v997, %v1008
  %vm1067 = vcmp.eq.s32.totalorder %v998, %v1008
  %vm1068 = vcmp.eq.s32.totalorder %v999, %v1008
  %vm1069 = vcmp.eq.s32.totalorder %v1000, %v1008
  %vm1070 = vcmp.eq.s32.totalorder %v1001, %v1008
  %vm1071 = vcmp.eq.s32.totalorder %v1002, %v1008
  %vm1072 = vcmp.eq.s32.totalorder %v1003, %v1008
  %v1073 = vsel %vm1009, 1, 0
  %v1074 = vsel %vm1010, 1, 0
  %v1075 = vsel %vm1011, 1, 0
  %v1076 = vsel %vm1012, 1, 0
  %v1077 = vsel %vm1013, 1, 0
  %v1078 = vsel %vm1014, 1, 0
  %v1079 = vsel %vm1015, 1, 0
  %v1080 = vsel %vm1016, 1, 0
  %v1081 = vsel %vm1017, 1, 0
  %v1082 = vsel %vm1018, 1, 0
  %v1083 = vsel %vm1019, 1, 0
  %v1084 = vsel %vm1020, 1, 0
  %v1085 = vsel %vm1021, 1, 0
  %v1086 = vsel %vm1022, 1, 0
  %v1087 = vsel %vm1023, 1, 0
  %v1088 = vsel %vm1024, 1, 0
  %v1089 = vsel %vm1025, 1, 0
  %v1090 = vsel %vm1026, 1, 0
  %v1091 = vsel %vm1027, 1, 0
  %v1092 = vsel %vm1028, 1, 0
  %v1093 = vsel %vm1029, 1, 0
  %v1094 = vsel %vm1030, 1, 0
  %v1095 = vsel %vm1031, 1, 0
  %v1096 = vsel %vm1032, 1, 0
  %v1097 = vsel %vm1033, 1, 0
  %v1098 = vsel %vm1034, 1, 0
  %v1099 = vsel %vm1035, 1, 0
  %v1100 = vsel %vm1036, 1, 0
  %v1101 = vsel %vm1037, 1, 0
  %v1102 = vsel %vm1038, 1, 0
  %v1103 = vsel %vm1039, 1, 0
  %v1104 = vsel %vm1040, 1, 0
  %v1105 = vsel %vm1041, 1, 0
  %v1106 = vsel %vm1042, 1, 0
  %v1107 = vsel %vm1043, 1, 0
  %v1108 = vsel %vm1044, 1, 0
  %v1109 = vsel %vm1045, 1, 0
  %v1110 = vsel %vm1046, 1, 0
  %v1111 = vsel %vm1047, 1, 0
  %v1112 = vsel %vm1048, 1, 0
  %v1113 = vsel %vm1049, 1, 0
  %v1114 = vsel %vm1050, 1, 0
  %v1115 = vsel %vm1051, 1, 0
  %v1116 = vsel %vm1052, 1, 0
  %v1117 = vsel %vm1053, 1, 0
  %v1118 = vsel %vm1054, 1, 0
  %v1119 = vsel %vm1055, 1, 0
  %v1120 = vsel %vm1056, 1, 0
  %v1121 = vsel %vm1057, 1, 0
  %v1122 = vsel %vm1058, 1, 0
  %v1123 = vsel %vm1059, 1, 0
  %v1124 = vsel %vm1060, 1, 0
  %v1125 = vsel %vm1061, 1, 0
  %v1126 = vsel %vm1062, 1, 0
  %v1127 = vsel %vm1063, 1, 0
  %v1128 = vsel %vm1064, 1, 0
  %v1129 = vsel %vm1065, 1, 0
  %v1130 = vsel %vm1066, 1, 0
  %v1131 = vsel %vm1067, 1, 0
  %v1132 = vsel %vm1068, 1, 0
  %v1133 = vsel %vm1069, 1, 0
  %v1134 = vsel %vm1070, 1, 0
  %v1135 = vsel %vm1071, 1, 0
  %v1136 = vsel %vm1072, 1, 0
  %v1137 = vcvt.s32.f32 %v1073
  %v1138 = vcvt.s32.f32 %v1074
  %v1139 = vcvt.s32.f32 %v1075
  %v1140 = vcvt.s32.f32 %v1076
  %v1141 = vcvt.s32.f32 %v1077
  %v1142 = vcvt.s32.f32 %v1078
  %v1143 = vcvt.s32.f32 %v1079
  %v1144 = vcvt.s32.f32 %v1080
  %v1145 = vcvt.s32.f32 %v1081
  %v1146 = vcvt.s32.f32 %v1082
  %v1147 = vcvt.s32.f32 %v1083
  %v1148 = vcvt.s32.f32 %v1084
  %v1149 = vcvt.s32.f32 %v1085
  %v1150 = vcvt.s32.f32 %v1086
  %v1151 = vcvt.s32.f32 %v1087
  %v1152 = vcvt.s32.f32 %v1088
  %v1153 = vcvt.s32.f32 %v1089
  %v1154 = vcvt.s32.f32 %v1090
  %v1155 = vcvt.s32.f32 %v1091
  %v1156 = vcvt.s32.f32 %v1092
  %v1157 = vcvt.s32.f32 %v1093
  %v1158 = vcvt.s32.f32 %v1094
  %v1159 = vcvt.s32.f32 %v1095
  %v1160 = vcvt.s32.f32 %v1096
  %v1161 = vcvt.s32.f32 %v1097
  %v1162 = vcvt.s32.f32 %v1098
  %v1163 = vcvt.s32.f32 %v1099
  %v1164 = vcvt.s32.f32 %v1100
  %v1165 = vcvt.s32.f32 %v1101
  %v1166 = vcvt.s32.f32 %v1102
  %v1167 = vcvt.s32.f32 %v1103
  %v1168 = vcvt.s32.f32 %v1104
  %v1169 = vcvt.s32.f32 %v1105
  %v1170 = vcvt.s32.f32 %v1106
  %v1171 = vcvt.s32.f32 %v1107
  %v1172 = vcvt.s32.f32 %v1108
  %v1173 = vcvt.s32.f32 %v1109
  %v1174 = vcvt.s32.f32 %v1110
  %v1175 = vcvt.s32.f32 %v1111
  %v1176 = vcvt.s32.f32 %v1112
  %v1177 = vcvt.s32.f32 %v1113
  %v1178 = vcvt.s32.f32 %v1114
  %v1179 = vcvt.s32.f32 %v1115
  %v1180 = vcvt.s32.f32 %v1116
  %v1181 = vcvt.s32.f32 %v1117
  %v1182 = vcvt.s32.f32 %v1118
  %v1183 = vcvt.s32.f32 %v1119
  %v1184 = vcvt.s32.f32 %v1120
  %v1185 = vcvt.s32.f32 %v1121
  %v1186 = vcvt.s32.f32 %v1122
  %v1187 = vcvt.s32.f32 %v1123
  %v1188 = vcvt.s32.f32 %v1124
  %v1189 = vcvt.s32.f32 %v1125
  %v1190 = vcvt.s32.f32 %v1126
  %v1191 = vcvt.s32.f32 %v1127
  %v1192 = vcvt.s32.f32 %v1128
  %v1193 = vcvt.s32.f32 %v1129
  %v1194 = vcvt.s32.f32 %v1130
  %v1195 = vcvt.s32.f32 %v1131
  %v1196 = vcvt.s32.f32 %v1132
  %v1197 = vcvt.s32.f32 %v1133
  %v1198 = vcvt.s32.f32 %v1134
  %v1199 = vcvt.s32.f32 %v1135
  %v1200 = vcvt.s32.f32 %v1136
  %v1201 = vld [vmem:[#allocation4] sm:$0xff]
  %v1202 = vld [vmem:[#allocation4 + $0x8] sm:$0xff]
  %v1203 = vld [vmem:[#allocation4 + $0x10] sm:$0xff]
  %v1204 = vld [vmem:[#allocation4 + $0x18] sm:$0xff]
  %v1205 = vld [vmem:[#allocation4 + $0x20] sm:$0xff]
  %v1206 = vld [vmem:[#allocation4 + $0x28] sm:$0xff]
  %v1207 = vld [vmem:[#allocation4 + $0x30] sm:$0xff]
  %v1208 = vld [vmem:[#allocation4 + $0x38] sm:$0xff]
  %v1209 = vld [vmem:[#allocation4 + $0x40] sm:$0xff]
  %v1210 = vld [vmem:[#allocation4 + $0x48] sm:$0xff]
  %v1211 = vld [vmem:[#allocation4 + $0x50] sm:$0xff]
  %v1212 = vld [vmem:[#allocation4 + $0x58] sm:$0xff]
  %v1213 = vld [vmem:[#allocation4 + $0x60] sm:$0xff]
  %v1214 = vld [vmem:[#allocation4 + $0x68] sm:$0xff]
  %v1215 = vld [vmem:[#allocation4 + $0x70] sm:$0xff]
  %v1216 = vld [vmem:[#allocation4 + $0x78] sm:$0xff]
  %1217 = vmatprep.subr.mxu0 0.0
  %1218 = vmatpush1.msra.mxu0 %v1137
  %1219 = vmatprep.subr.mxu0 0.0
  %1220 = vmatpush1.msra.mxu0 %v1138
  %1221 = vmatprep.subr.mxu0 0.0
  %1222 = vmatpush1.msra.mxu0 %v1139
  %1223 = vmatprep.subr.mxu0 0.0
  %1224 = vmatpush1.msra.mxu0 %v1140
  %1225 = vmatprep.subr.mxu0 0.0
  %1226 = vmatpush1.msra.mxu0 %v1141
  %1227 = vmatprep.subr.mxu0 0.0
  %1228 = vmatpush1.msra.mxu0 %v1142
  %1229 = vmatprep.subr.mxu0 0.0
  %1230 = vmatpush1.msra.mxu0 %v1143
  %1231 = vmatprep.subr.mxu0 0.0
  %1232 = vmatpush1.msra.mxu0 %v1144
  %1233 = vmatprep.subr.mxu0 0.0
  %1234 = vmatpush1.msra.mxu0 %v1145
  %1235 = vmatprep.subr.mxu0 0.0
  %1236 = vmatpush1.msra.mxu0 %v1146
  %1237 = vmatprep.subr.mxu0 0.0
  %1238 = vmatpush1.msra.mxu0 %v1147
  %1239 = vmatprep.subr.mxu0 0.0
  %1240 = vmatpush1.msra.mxu0 %v1148
  %1241 = vmatprep.subr.mxu0 0.0
  %1242 = vmatpush1.msra.mxu0 %v1149
  %1243 = vmatprep.subr.mxu0 0.0
  %1244 = vmatpush1.msra.mxu0 %v1150
  %1245 = vmatprep.subr.mxu0 0.0
  %1246 = vmatpush1.msra.mxu0 %v1151
  %1247 = vmatprep.subr.mxu0 0.0
  %1248 = vmatpush1.msra.mxu0 %v1152
  %1249 = vmatprep.subr.mxu0 0.0
  %1250 = vmatpush1.msra.mxu0 %v1153
  %1251 = vmatprep.subr.mxu0 0.0
  %1252 = vmatpush1.msra.mxu0 %v1154
  %1253 = vmatprep.subr.mxu0 0.0
  %1254 = vmatpush1.msra.mxu0 %v1155
  %1255 = vmatprep.subr.mxu0 0.0
  %1256 = vmatpush1.msra.mxu0 %v1156
  %1257 = vmatprep.subr.mxu0 0.0
  %1258 = vmatpush1.msra.mxu0 %v1157
  %1259 = vmatprep.subr.mxu0 0.0
  %1260 = vmatpush1.msra.mxu0 %v1158
  %1261 = vmatprep.subr.mxu0 0.0
  %1262 = vmatpush1.msra.mxu0 %v1159
  %1263 = vmatprep.subr.mxu0 0.0
  %1264 = vmatpush1.msra.mxu0 %v1160
  %1265 = vmatprep.subr.mxu0 0.0
  %1266 = vmatpush1.msra.mxu0 %v1161
  %1267 = vmatprep.subr.mxu0 0.0
  %1268 = vmatpush1.msra.mxu0 %v1162
  %1269 = vmatprep.subr.mxu0 0.0
  %1270 = vmatpush1.msra.mxu0 %v1163
  %1271 = vmatprep.subr.mxu0 0.0
  %1272 = vmatpush1.msra.mxu0 %v1164
  %1273 = vmatprep.subr.mxu0 0.0
  %1274 = vmatpush1.msra.mxu0 %v1165
  %1275 = vmatprep.subr.mxu0 0.0
  %1276 = vmatpush1.msra.mxu0 %v1166
  %1277 = vmatprep.subr.mxu0 0.0
  %1278 = vmatpush1.msra.mxu0 %v1167
  %1279 = vmatprep.subr.mxu0 0.0
  %1280 = vmatpush1.msra.mxu0 %v1168
  %1281 = vmatprep.mubr.f32.mxu0 %v369
  %1282 = vmatmul.mubr.f32.gmra.mrb[0].mxu0 %v368
  %v1283 = vpop.f32.mrb[0].mxu0
  %v1284 = vadd.f32 0.0, %v1283
  %v1285 = vpop.f32.mrb[0].mxu0
  %1286 = vmatprep.mubr.f32.mxu0 %v373
  %1287 = vmatmul.mubr.f32.gmra.mrb[0].mxu0 %v372
  %v1288 = vpop.f32.mrb[0].mxu0
  %v1289 = vadd.f32 0.0, %v1288
  %v1290 = vpop.f32.mrb[0].mxu0
  %1291 = vmatprep.mubr.f32.mxu0 %v377
  %1292 = vmatmul.mubr.f32.gmra.mrb[0].mxu0 %v376
  %v1293 = vpop.f32.mrb[0].mxu0
  %v1294 = vadd.f32 0.0, %v1293
  %v1295 = vpop.f32.mrb[0].mxu0
  %1296 = vmatprep.mubr.f32.mxu0 %v381
  %1297 = vmatmul.mubr.f32.gmra.mrb[0].mxu0 %v380
  %v1298 = vpop.f32.mrb[0].mxu0
  %v1299 = vadd.f32 0.0, %v1298
  %v1300 = vpop.f32.mrb[0].mxu0
  %1301 = vmatprep.mubr.f32.mxu0 %v385
  %1302 = vmatmul.mubr.f32.gmra.mrb[0].mxu0 %v384
  %v1303 = vpop.f32.mrb[0].mxu0
  %v1304 = vadd.f32 0.0, %v1303
  %v1305 = vpop.f32.mrb[0].mxu0
  %1306 = vmatprep.mubr.f32.mxu0 %v389
  %1307 = vmatmul.mubr.f32.gmra.mrb[0].mxu0 %v388
  %v1308 = vpop.f32.mrb[0].mxu0
  %v1309 = vadd.f32 0.0, %v1308
  %v1310 = vpop.f32.mrb[0].mxu0
  %1311 = vmatprep.mubr.f32.mxu0 %v393
  %1312 = vmatmul.mubr.f32.gmra.mrb[0].mxu0 %v392
  %v1313 = vpop.f32.mrb[0].mxu0
  %v1314 = vadd.f32 0.0, %v1313
  %v1315 = vpop.f32.mrb[0].mxu0
  %1316 = vmatprep.mubr.f32.mxu0 %v397
  %1317 = vmatmul.mubr.f32.gmra.mrb[0].mxu0 %v396
  %v1318 = vpop.f32.mrb[0].mxu0
  %v1319 = vadd.f32 0.0, %v1318
  %v1320 = vpop.f32.mrb[0].mxu0
  %1321 = vmatprep.mubr.f32.mxu0 %v401
  %1322 = vmatmul.mubr.f32.gmra.mrb[0].mxu0 %v400
  %v1323 = vpop.f32.mrb[0].mxu0
  %v1324 = vadd.f32 0.0, %v1323
  %v1325 = vpop.f32.mrb[0].mxu0
  %1326 = vmatprep.mubr.f32.mxu0 %v405
  %1327 = vmatmul.mubr.f32.gmra.mrb[0].mxu0 %v404
  %v1328 = vpop.f32.mrb[0].mxu0
  %v1329 = vadd.f32 0.0, %v1328
  %v1330 = vpop.f32.mrb[0].mxu0
  %1331 = vmatprep.mubr.f32.mxu0 %v409
  %1332 = vmatmul.mubr.f32.gmra.mrb[0].mxu0 %v408
  %v1333 = vpop.f32.mrb[0].mxu0
  %v1334 = vadd.f32 0.0, %v1333
  %v1335 = vpop.f32.mrb[0].mxu0
  %1336 = vmatprep.mubr.f32.mxu0 %v413
  %1337 = vmatmul.mubr.f32.gmra.mrb[0].mxu0 %v412
  %v1338 = vpop.f32.mrb[0].mxu0
  %v1339 = vadd.f32 0.0, %v1338
  %v1340 = vpop.f32.mrb[0].mxu0
  %1341 = vmatprep.mubr.f32.mxu0 %v417
  %1342 = vmatmul.mubr.f32.gmra.mrb[0].mxu0 %v416
  %v1343 = vpop.f32.mrb[0].mxu0
  %v1344 = vadd.f32 0.0, %v1343
  %v1345 = vpop.f32.mrb[0].mxu0
  %1346 = vmatprep.mubr.f32.mxu0 %v421
  %1347 = vmatmul.mubr.f32.gmra.mrb[0].mxu0 %v420
  %v1348 = vpop.f32.mrb[0].mxu0
  %v1349 = vadd.f32 0.0, %v1348
  %v1350 = vpop.f32.mrb[0].mxu0
  %1351 = vmatprep.mubr.f32.mxu0 %v425
  %1352 = vmatmul.mubr.f32.gmra.mrb[0].mxu0 %v424
  %v1353 = vpop.f32.mrb[0].mxu0
  %v1354 = vadd.f32 0.0, %v1353
  %v1355 = vpop.f32.mrb[0].mxu0
  %1356 = vmatprep.mubr.f32.mxu0 %v429
  %1357 = vmatmul.mubr.f32.gmra.mrb[0].mxu0 %v428
  %v1358 = vpop.f32.mrb[0].mxu0
  %v1359 = vadd.f32 0.0, %v1358
  %v1360 = vpop.f32.mrb[0].mxu0
  %1361 = vdwg.mxu0
  %1362 = vmatprep.subr.mxu0 0.0
  %1363 = vmatpush1.msra.mxu0 %v1169
  %1364 = vmatprep.subr.mxu0 0.0
  %1365 = vmatpush1.msra.mxu0 %v1170
  %1366 = vmatprep.subr.mxu0 0.0
  %1367 = vmatpush1.msra.mxu0 %v1171
  %1368 = vmatprep.subr.mxu0 0.0
  %1369 = vmatpush1.msra.mxu0 %v1172
  %1370 = vmatprep.subr.mxu0 0.0
  %1371 = vmatpush1.msra.mxu0 %v1173
  %1372 = vmatprep.subr.mxu0 0.0
  %1373 = vmatpush1.msra.mxu0 %v1174
  %1374 = vmatprep.subr.mxu0 0.0
  %1375 = vmatpush1.msra.mxu0 %v1175
  %1376 = vmatprep.subr.mxu0 0.0
  %1377 = vmatpush1.msra.mxu0 %v1176
  %1378 = vmatprep.subr.mxu0 0.0
  %1379 = vmatpush1.msra.mxu0 %v1177
  %1380 = vmatprep.subr.mxu0 0.0
  %1381 = vmatpush1.msra.mxu0 %v1178
  %1382 = vmatprep.subr.mxu0 0.0
  %1383 = vmatpush1.msra.mxu0 %v1179
  %1384 = vmatprep.subr.mxu0 0.0
  %1385 = vmatpush1.msra.mxu0 %v1180
  %1386 = vmatprep.subr.mxu0 0.0
  %1387 = vmatpush1.msra.mxu0 %v1181
  %1388 = vmatprep.subr.mxu0 0.0
  %1389 = vmatpush1.msra.mxu0 %v1182
  %1390 = vmatprep.subr.mxu0 0.0
  %1391 = vmatpush1.msra.mxu0 %v1183
  %1392 = vmatprep.subr.mxu0 0.0
  %1393 = vmatpush1.msra.mxu0 %v1184
  %1394 = vmatprep.subr.mxu0 0.0
  %1395 = vmatpush1.msra.mxu0 %v1185
  %1396 = vmatprep.subr.mxu0 0.0
  %1397 = vmatpush1.msra.mxu0 %v1186
  %1398 = vmatprep.subr.mxu0 0.0
  %1399 = vmatpush1.msra.mxu0 %v1187
  %1400 = vmatprep.subr.mxu0 0.0
  %1401 = vmatpush1.msra.mxu0 %v1188
  %1402 = vmatprep.subr.mxu0 0.0
  %1403 = vmatpush1.msra.mxu0 %v1189
  %1404 = vmatprep.subr.mxu0 0.0
  %1405 = vmatpush1.msra.mxu0 %v1190
  %1406 = vmatprep.subr.mxu0 0.0
  %1407 = vmatpush1.msra.mxu0 %v1191
  %1408 = vmatprep.subr.mxu0 0.0
  %1409 = vmatpush1.msra.mxu0 %v1192
  %1410 = vmatprep.subr.mxu0 0.0
  %1411 = vmatpush1.msra.mxu0 %v1193
  %1412 = vmatprep.subr.mxu0 0.0
  %1413 = vmatpush1.msra.mxu0 %v1194
  %1414 = vmatprep.subr.mxu0 0.0
  %1415 = vmatpush1.msra.mxu0 %v1195
  %1416 = vmatprep.subr.mxu0 0.0
  %1417 = vmatpush1.msra.mxu0 %v1196
  %1418 = vmatprep.subr.mxu0 0.0
  %1419 = vmatpush1.msra.mxu0 %v1197
  %1420 = vmatprep.subr.mxu0 0.0
  %1421 = vmatpush1.msra.mxu0 %v1198
  %1422 = vmatprep.subr.mxu0 0.0
  %1423 = vmatpush1.msra.mxu0 %v1199
  %1424 = vmatprep.subr.mxu0 0.0
  %1425 = vmatpush1.msra.mxu0 %v1200
  %1426 = vmatprep.mubr.f32.mxu0 %v371
  %1427 = vmatmul.mubr.f32.gmra.mrb[0].mxu0 %v370
  %v1428 = vpop.f32.mrb[0].mxu0
  %v1429 = vadd.f32 %v1284, %v1428
  %v1430 = vpop.f32.mrb[0].mxu0
  %1431 = vmatprep.mubr.f32.mxu0 %v375
  %1432 = vmatmul.mubr.f32.gmra.mrb[0].mxu0 %v374
  %v1433 = vpop.f32.mrb[0].mxu0
  %v1434 = vadd.f32 %v1289, %v1433
  %v1435 = vpop.f32.mrb[0].mxu0
  %1436 = vmatprep.mubr.f32.mxu0 %v379
  %1437 = vmatmul.mubr.f32.gmra.mrb[0].mxu0 %v378
  %v1438 = vpop.f32.mrb[0].mxu0
  %v1439 = vadd.f32 %v1294, %v1438
  %v1440 = vpop.f32.mrb[0].mxu0
  %1441 = vmatprep.mubr.f32.mxu0 %v383
  %1442 = vmatmul.mubr.f32.gmra.mrb[0].mxu0 %v382
  %v1443 = vpop.f32.mrb[0].mxu0
  %v1444 = vadd.f32 %v1299, %v1443
  %v1445 = vpop.f32.mrb[0].mxu0
  %1446 = vmatprep.mubr.f32.mxu0 %v387
  %1447 = vmatmul.mubr.f32.gmra.mrb[0].mxu0 %v386
  %v1448 = vpop.f32.mrb[0].mxu0
  %v1449 = vadd.f32 %v1304, %v1448
  %v1450 = vpop.f32.mrb[0].mxu0
  %1451 = vmatprep.mubr.f32.mxu0 %v391
  %1452 = vmatmul.mubr.f32.gmra.mrb[0].mxu0 %v390
  %v1453 = vpop.f32.mrb[0].mxu0
  %v1454 = vadd.f32 %v1309, %v1453
  %v1455 = vpop.f32.mrb[0].mxu0
  %1456 = vmatprep.mubr.f32.mxu0 %v395
  %1457 = vmatmul.mubr.f32.gmra.mrb[0].mxu0 %v394
  %v1458 = vpop.f32.mrb[0].mxu0
  %v1459 = vadd.f32 %v1314, %v1458
  %v1460 = vpop.f32.mrb[0].mxu0
  %1461 = vmatprep.mubr.f32.mxu0 %v399
  %1462 = vmatmul.mubr.f32.gmra.mrb[0].mxu0 %v398
  %v1463 = vpop.f32.mrb[0].mxu0
  %v1464 = vadd.f32 %v1319, %v1463
  %v1465 = vpop.f32.mrb[0].mxu0
  %1466 = vmatprep.mubr.f32.mxu0 %v403
  %1467 = vmatmul.mubr.f32.gmra.mrb[0].mxu0 %v402
  %v1468 = vpop.f32.mrb[0].mxu0
  %v1469 = vadd.f32 %v1324, %v1468
  %v1470 = vpop.f32.mrb[0].mxu0
  %1471 = vmatprep.mubr.f32.mxu0 %v407
  %1472 = vmatmul.mubr.f32.gmra.mrb[0].mxu0 %v406
  %v1473 = vpop.f32.mrb[0].mxu0
  %v1474 = vadd.f32 %v1329, %v1473
  %v1475 = vpop.f32.mrb[0].mxu0
  %1476 = vmatprep.mubr.f32.mxu0 %v411
  %1477 = vmatmul.mubr.f32.gmra.mrb[0].mxu0 %v410
  %v1478 = vpop.f32.mrb[0].mxu0
  %v1479 = vadd.f32 %v1334, %v1478
  %v1480 = vpop.f32.mrb[0].mxu0
  %1481 = vmatprep.mubr.f32.mxu0 %v415
  %1482 = vmatmul.mubr.f32.gmra.mrb[0].mxu0 %v414
  %v1483 = vpop.f32.mrb[0].mxu0
  %v1484 = vadd.f32 %v1339, %v1483
  %v1485 = vpop.f32.mrb[0].mxu0
  %1486 = vmatprep.mubr.f32.mxu0 %v419
  %1487 = vmatmul.mubr.f32.gmra.mrb[0].mxu0 %v418
  %v1488 = vpop.f32.mrb[0].mxu0
  %v1489 = vadd.f32 %v1344, %v1488
  %v1490 = vpop.f32.mrb[0].mxu0
  %1491 = vmatprep.mubr.f32.mxu0 %v423
  %1492 = vmatmul.mubr.f32.gmra.mrb[0].mxu0 %v422
  %v1493 = vpop.f32.mrb[0].mxu0
  %v1494 = vadd.f32 %v1349, %v1493
  %v1495 = vpop.f32.mrb[0].mxu0
  %1496 = vmatprep.mubr.f32.mxu0 %v427
  %1497 = vmatmul.mubr.f32.gmra.mrb[0].mxu0 %v426
  %v1498 = vpop.f32.mrb[0].mxu0
  %v1499 = vadd.f32 %v1354, %v1498
  %v1500 = vpop.f32.mrb[0].mxu0
  %1501 = vmatprep.mubr.f32.mxu0 %v431
  %1502 = vmatmul.mubr.f32.gmra.mrb[0].mxu0 %v430
  %v1503 = vpop.f32.mrb[0].mxu0
  %v1504 = vadd.f32 %v1359, %v1503
  %v1505 = vpop.f32.mrb[0].mxu0
  %1506 = vdwg.mxu0
  %v1507 = vadd.f32 %v1201, %v1429
  %v1508 = vadd.f32 %v1202, %v1434
  %v1509 = vadd.f32 %v1203, %v1439
  %v1510 = vadd.f32 %v1204, %v1444
  %v1511 = vadd.f32 %v1205, %v1449
  %v1512 = vadd.f32 %v1206, %v1454
  %v1513 = vadd.f32 %v1207, %v1459
  %v1514 = vadd.f32 %v1208, %v1464
  %v1515 = vadd.f32 %v1209, %v1469
  %v1516 = vadd.f32 %v1210, %v1474
  %v1517 = vadd.f32 %v1211, %v1479
  %v1518 = vadd.f32 %v1212, %v1484
  %v1519 = vadd.f32 %v1213, %v1489
  %v1520 = vadd.f32 %v1214, %v1494
  %v1521 = vadd.f32 %v1215, %v1499
  %v1522 = vadd.f32 %v1216, %v1504
  %vm1523 = vcmask 64512
  %1524 = vst.msk [vmem:[#allocation4] sm:$0xff] %vm1523, %v1507
  %1525 = vst.msk [vmem:[#allocation4 + $0x8] sm:$0xff] %vm1523, %v1508
  %1526 = vst.msk [vmem:[#allocation4 + $0x10] sm:$0xff] %vm1523, %v1509
  %1527 = vst.msk [vmem:[#allocation4 + $0x18] sm:$0xff] %vm1523, %v1510
  %1528 = vst.msk [vmem:[#allocation4 + $0x20] sm:$0xff] %vm1523, %v1511
  %1529 = vst.msk [vmem:[#allocation4 + $0x28] sm:$0xff] %vm1523, %v1512
  %1530 = vst.msk [vmem:[#allocation4 + $0x30] sm:$0xff] %vm1523, %v1513
  %1531 = vst.msk [vmem:[#allocation4 + $0x38] sm:$0xff] %vm1523, %v1514
  %1532 = vst.msk [vmem:[#allocation4 + $0x40] sm:$0xff] %vm1523, %v1515
  %1533 = vst.msk [vmem:[#allocation4 + $0x48] sm:$0xff] %vm1523, %v1516
  %1534 = vst.msk [vmem:[#allocation4 + $0x50] sm:$0xff] %vm1523, %v1517
  %1535 = vst.msk [vmem:[#allocation4 + $0x58] sm:$0xff] %vm1523, %v1518
  %1536 = vst.msk [vmem:[#allocation4 + $0x60] sm:$0xff] %vm1523, %v1519
  %1537 = vst.msk [vmem:[#allocation4 + $0x68] sm:$0xff] %vm1523, %v1520
  %1538 = vst.msk [vmem:[#allocation4 + $0x70] sm:$0xff] %vm1523, %v1521
  %1539 = vst.msk [vmem:[#allocation4 + $0x78] sm:$0xff] %vm1523, %v1522
  // Predicated region
  $region30: #{mp_balance_forward.1} parent=0 // pred_check
    %p1540 = pneg %p35
  $region31: #{mp_balance_forward.1} parent=0 // pred_check_branch
    %1542 = sbr.rel (%p1540) target = $region33
  $region32: #{mp_balance_forward.1} parent=0 // pred_region
    %vm1543 = vcmp.eq.s32.totalorder %v876, %v62
    %v1544 = vsel %vm1543, %v643, 0.0
    %v1545 = vsel %vm1523, %v1544, 0.0
    %1546 = vadd.xlane.f32.xlu0 %v1545
    %v1547 = vpop.xlane.xlu0 %1546
    %v1548 = vmul.f32 %v1547, %v823
    %v1549 = vadd.f32 %v1548, %v828
    %v1550 = vld [vmem:[#allocation2] sm:$0xff]
    %v1551 = vld [vmem:[#allocation3] sm:$0xff]
    %v1552 = vlog2.pop %v1551
    %v1553 = vmul.f32 %v1552, 0.6931472
    %v1554 = vadd.f32 %v1550, %v1553
    %v1555 = vsub.f32 %v1554, %v1549
    %1556 = vst.msk [vmem:[%s7] sm:$0xff] %vm872, %v1555
    %v1557 = vld [vmem:[#allocation4] sm:$0xff]
    %v1558 = vld [vmem:[#allocation4 + $0x8] sm:$0xff]
    %v1559 = vld [vmem:[#allocation4 + $0x10] sm:$0xff]
    %v1560 = vld [vmem:[#allocation4 + $0x18] sm:$0xff]
    %v1561 = vld [vmem:[#allocation4 + $0x20] sm:$0xff]
    %v1562 = vld [vmem:[#allocation4 + $0x28] sm:$0xff]
    %v1563 = vld [vmem:[#allocation4 + $0x30] sm:$0xff]
    %v1564 = vld [vmem:[#allocation4 + $0x38] sm:$0xff]
    %v1565 = vld [vmem:[#allocation4 + $0x40] sm:$0xff]
    %v1566 = vld [vmem:[#allocation4 + $0x48] sm:$0xff]
    %v1567 = vld [vmem:[#allocation4 + $0x50] sm:$0xff]
    %v1568 = vld [vmem:[#allocation4 + $0x58] sm:$0xff]
    %v1569 = vld [vmem:[#allocation4 + $0x60] sm:$0xff]
    %v1570 = vld [vmem:[#allocation4 + $0x68] sm:$0xff]
    %v1571 = vld [vmem:[#allocation4 + $0x70] sm:$0xff]
    %v1572 = vld [vmem:[#allocation4 + $0x78] sm:$0xff]
    %1573 = vmatprep.subr.mxu0 0.0
    %1574 = vmatpush1.msra.mxu0 %v1557
    %1575 = vmatprep.subr.mxu0 0.0
    %1576 = vmatpush1.msra.mxu0 %v1558
    %1577 = vmatprep.subr.mxu0 0.0
    %1578 = vmatpush1.msra.mxu0 %v1559
    %1579 = vmatprep.subr.mxu0 0.0
    %1580 = vmatpush1.msra.mxu0 %v1560
    %1581 = vmatprep.subr.mxu0 0.0
    %1582 = vmatpush1.msra.mxu0 %v1561
    %1583 = vmatprep.subr.mxu0 0.0
    %1584 = vmatpush1.msra.mxu0 %v1562
    %1585 = vmatprep.subr.mxu0 0.0
    %1586 = vmatpush1.msra.mxu0 %v1563
    %1587 = vmatprep.subr.mxu0 0.0
    %1588 = vmatpush1.msra.mxu0 %v1564
    %1589 = vmatprep.subr.mxu0 0.0
    %1590 = vmatpush1.msra.mxu0 %v1565
    %1591 = vmatprep.subr.mxu0 0.0
    %1592 = vmatpush1.msra.mxu0 %v1566
    %1593 = vmatprep.subr.mxu0 0.0
    %1594 = vmatpush1.msra.mxu0 %v1567
    %1595 = vmatprep.subr.mxu0 0.0
    %1596 = vmatpush1.msra.mxu0 %v1568
    %1597 = vmatprep.subr.mxu0 0.0
    %1598 = vmatpush1.msra.mxu0 %v1569
    %1599 = vmatprep.subr.mxu0 0.0
    %1600 = vmatpush1.msra.mxu0 %v1570
    %1601 = vmatprep.subr.mxu0 0.0
    %1602 = vmatpush1.msra.mxu0 %v1571
    %1603 = vmatprep.subr.mxu0 0.0
    %1604 = vmatpush1.msra.mxu0 %v1572
    %1605 = vmatprep.subr.mxu0 0.0
    %1606 = vmatpush1.msra.mxu0 0.0
    %1607 = vmatprep.subr.mxu0 0.0
    %1608 = vmatpush1.msra.mxu0 0.0
    %1609 = vmatprep.subr.mxu0 0.0
    %1610 = vmatpush1.msra.mxu0 0.0
    %1611 = vmatprep.subr.mxu0 0.0
    %1612 = vmatpush1.msra.mxu0 0.0
    %1613 = vmatprep.subr.mxu0 0.0
    %1614 = vmatpush1.msra.mxu0 0.0
    %1615 = vmatprep.subr.mxu0 0.0
    %1616 = vmatpush1.msra.mxu0 0.0
    %1617 = vmatprep.subr.mxu0 0.0
    %1618 = vmatpush1.msra.mxu0 0.0
    %1619 = vmatprep.subr.mxu0 0.0
    %1620 = vmatpush1.msra.mxu0 0.0
    %1621 = vmatprep.subr.mxu0 0.0
    %1622 = vmatpush1.msra.mxu0 0.0
    %1623 = vmatprep.subr.mxu0 0.0
    %1624 = vmatpush1.msra.mxu0 0.0
    %1625 = vmatprep.subr.mxu0 0.0
    %1626 = vmatpush1.msra.mxu0 0.0
    %1627 = vmatprep.subr.mxu0 0.0
    %1628 = vmatpush1.msra.mxu0 0.0
    %1629 = vmatprep.subr.mxu0 0.0
    %1630 = vmatpush1.msra.mxu0 0.0
    %1631 = vmatprep.subr.mxu0 0.0
    %1632 = vmatpush1.msra.mxu0 0.0
    %1633 = vmatprep.subr.mxu0 0.0
    %1634 = vmatpush1.msra.mxu0 0.0
    %1635 = vmatprep.subr.mxu0 0.0
    %1636 = vmatpush1.msra.mxu0 0.0
    %1637 = vmatprep.mubr.f32.mxu0 0.0
    %1638 = vmatmul.mubr.f32.gmra.mrb[0].mxu0 %v433
    %v1639 = vpop.f32.mrb[0].mxu0
    %v1640 = vadd.f32 0.0, %v1639
    %v1641 = vpop.f32.mrb[0].mxu0
    %1642 = vdwg.mxu0
    %v1643 = vmul.f32 %v1640, %v823
    %v1644 = vadd.f32 %v1643, %v828
    %v1645 = vsel %vm1523, %v1644, -inf
    %1646 = vmax.xlane.f32.xlu0 %v1645
    %v1647 = vpop.xlane.xlu0 %1646
    %v1648 = vsub.f32 %v1644, %v1647
    %v1649 = vmul.f32 %v1648, 1.442695
    %v1650 = vpow.pop %v1649
    %v1651 = vsel %vm1523, %v1650, 0.0
    %1652 = vadd.xlane.f32.xlu0 %v1651
    %v1653 = vpop.xlane.xlu0 %1652
    %v1654 = vlog2.pop %v1653
    %v1655 = vmul.f32 %v1654, 0.6931472
    %v1656 = vadd.f32 %v1647, %v1655
    %v1657 = vsel %vm1543, %v1644, 0.0
    %v1658 = vsel %vm1523, %v1657, 0.0
    %1659 = vadd.xlane.f32.xlu0 %v1658
    %v1660 = vpop.xlane.xlu0 %1659
    %v1661 = vsub.f32 %v1656, %v1660
    %1662 = vst.msk [vmem:[%s8] sm:$0xff] %vm872, %v1661
    %vm1663 = vcmp.eq.f32.partialorder %v1644, %v1647
    %v1664 = vsel %vm1663, %v62, 8
    %v1665 = vsel %vm1523, %v1664, 2147483647
    %v1666 = vand.u32 %v1665, 65535
    %v1667 = vshra.s32 %v1665, 16
    %v1668 = vcvt.s32.f32 %v1666
    %v1669 = vcvt.s32.f32 %v1667
    %1670 = vmin.xlane.f32.xlu0 %v1669
    %v1671 = vpop.xlane.xlu0 %1670
    %vm1672 = vcmp.eq.f32.partialorder %v1669, %v1671
    %v1673 = vsel %vm1672, %v1668, inf
    %1674 = vmin.xlane.f32.xlu0 %v1673
    %v1675 = vpop.xlane.xlu0 %1674
    %v1676 = vcvt.f32.s32 %v1675
    %v1677 = vcvt.f32.s32 %v1671
    %v1678 = vshll.u32 %v1677, 16
    %v1679 = vadd.s32 %v1678, %v1676
    %vm1680 = vcmp.eq.s32.totalorder %v1679, %v876
    %v1681 = vsel %vm1680, 1, 0
    %v1682 = vcvt.s32.f32 %v1681
    %1683 = vst.msk [vmem:[%s9] sm:$0xff] %vm872, %v1682
  $region33: #{mp_balance_forward.1} parent=0 // pred_fallthru
    _
  // Predicated region
  $region34: #{mp_balance_forward.1} parent=0 // pred_check
    _
  $region35: #{mp_balance_forward.1} parent=0 // pred_check_branch
    %1685 = sbr.rel (0) target = $region37
  $region36: #{mp_balance_forward.1} parent=0 // pred_region
    _
  $region37: #{mp_balance_forward.1} parent=0 // pred_fallthru
    _
  // Predicated region
  $region38: #{mp_balance_forward.1} parent=0 // pred_check
    _
  $region39: #{mp_balance_forward.1} parent=0 // pred_check_branch
    %1687 = sbr.rel (0) target = $region41
  $region40: #{mp_balance_forward.1} parent=0 // pred_region
    _
  $region41: #{mp_balance_forward.1} parent=0 // pred_fallthru
    _
  // Predicated region
  $region42: #{mp_balance_forward.1} parent=0 // pred_check
    _
  $region43: #{mp_balance_forward.1} parent=0 // pred_check_branch
    %1689 = sbr.rel (0) target = $region45
  $region44: #{mp_balance_forward.1} parent=0 // pred_region
    _
  $region45: #{mp_balance_forward.1} parent=0 // pred_fallthru
    _
  // Predicated region
  $region46: #{mp_balance_forward.1} parent=0 // pred_check
    _
  $region47: #{mp_balance_forward.1} parent=0 // pred_check_branch
    %1691 = sbr.rel (0) target = $region49
  $region48: #{mp_balance_forward.1} parent=0 // pred_region
    _
  $region49: #{mp_balance_forward.1} parent=0 // pred_fallthru
    _
  // Predicated region
  $region50: #{mp_balance_forward.1} parent=0 // pred_check
    _
  $region51: #{mp_balance_forward.1} parent=0 // pred_check_branch
    %1693 = sbr.rel (0) target = $region53
  $region52: #{mp_balance_forward.1} parent=0 // pred_region
    _
  $region53: #{mp_balance_forward.1} parent=0 // pred_fallthru
    _
  // Predicated region
  $region54: #{mp_balance_forward.1} parent=0 // pred_check
    _
  $region55: #{mp_balance_forward.1} parent=0 // pred_check_branch
    %1695 = sbr.rel (0) target = $region57
  $region56: #{mp_balance_forward.1} parent=0 // pred_region
    _
  $region57: #{mp_balance_forward.1} parent=0 // pred_fallthru
    _

</llo_original>
